<compile_context>
chip_gen: v7x
topology: tpu7x:2x2x1
jax: 0.10.0
libtpu: 0.0.40
codegen_flags: <defaults>
</compile_context>

<pallas_src>
import functools
import math

import jax
import jax.numpy as jnp
import numpy as np
from jax import lax
from jax.experimental import pallas as pl
from jax.experimental.pallas import tpu as pltpu


def _round_up(x, m):
    return ((x + m - 1) // m) * m


def _packed_gather(idx_all, wrep_ref, col, vocab, pack):
    """Vectorized packed row gather.

    Output[j, c] = wt_b[idx_all[j, c // vocab], c % vocab], i.e. `pack`
    consecutive logits rows packed along the 128-lane axis.  Implemented as a
    `vocab`-way compare/select against the lane-replicated weight rows
    (wrep[k, c] = wt_b[k, c % vocab]) — pure VPU work, exact f32.
    """
    tq, lanes = col.shape
    # Broadcast each packed column's token id across its vocab-wide lane segment.
    idx_lane = jnp.zeros((tq, lanes), jnp.int32)
    for q in range(pack):
        seg = jnp.logical_and(col >= q * vocab, col < (q + 1) * vocab)
        idx_lane = jnp.where(seg, idx_all[:, q:q + 1], idx_lane)
    acc = jnp.zeros((tq, lanes), jnp.float32)
    for k in range(vocab):
        acc = acc + jnp.where(idx_lane == k, wrep_ref[k:k + 1, :], 0.0)
    return acc


def _bigram_logits_kernel(idx_ref, wrep_ref, logits_ref, *, vocab, pack):
    """Inference path: packed logits only (no CE work at all)."""
    tq, lanes = logits_ref.shape
    col = lax.broadcasted_iota(jnp.int32, (tq, lanes), 1)
    logits_ref[...] = _packed_gather(idx_ref[...], wrep_ref, col, vocab, pack)


def _bigram_loss_kernel(idx_ref, tgt_ref, ividx_ref, wrep_ref, wtbt_ref,
                        logits_ref, loss_ref, *, vocab, pack):
    """Training path: packed logits + per-step summed-CE partial (8,128) block."""
    tq, lanes = logits_ref.shape
    col = lax.broadcasted_iota(jnp.int32, (tq, lanes), 1)

    logits = _packed_gather(idx_ref[...], wrep_ref, col, vocab, pack)
    logits_ref[...] = logits                      # lane-dense full-tile store

    # target one-hot in packed-lane space (wrapper pre-offsets valid targets by
    # q*vocab; ignored/padded rows carry -1, which never matches col >= 0)
    tgt_off = tgt_ref[...]                        # (tq, pack) int32
    tmask = jnp.zeros((tq, lanes), jnp.float32)
    for q in range(pack):
        tmask = tmask + (col == tgt_off[:, q:q + 1]).astype(jnp.float32)

    # valid-row token counts per vocab value (for the lse term); ividx carries
    # the raw token id for rows with a non-ignored target, -1 otherwise.
    col_v = lax.broadcasted_iota(jnp.int32, (tq, vocab), 1)
    ividx = ividx_ref[...]                        # (tq, pack) int32
    imask = jnp.zeros((tq, vocab), jnp.float32)
    for q in range(pack):
        imask = imask + (col_v == ividx[:, q:q + 1]).astype(jnp.float32)

    # per-token logsumexp table: logits row depends only on the input token, so
    # lse is a (1, vocab) table computed from the resident (V, V) weights.
    wtbt = wtbt_ref[...]                          # (V, V) = [class, token]
    mx = jnp.max(wtbt, axis=0, keepdims=True)     # (1, V)
    lse = mx + jnp.log(jnp.sum(jnp.exp(wtbt - mx), axis=0, keepdims=True))

    partial = jnp.sum(imask * lse) - jnp.sum(tmask * logits)
    loss_ref[...] = jnp.zeros_like(loss_ref) + partial   # broadcast scalar


def bigram_forward(idx, W, b, targets=None, *, tile_n=None):
    """JAX wrapper mirroring Bigram.forward(idx, targets)."""
    B, T = idx.shape
    V = W.shape[0]
    N = B * T

    pack = (128 // V) if (V <= 128 and 128 % V == 0) else 1
    lanes = V * pack
    row_align = 8 * pack                          # packed 2nd-minor must be %8

    # Tiling is per-step-overhead bound, not VMEM bound: a (2048/pack, 128) f32
    # logits block is ~1 MiB x 2 buffers, well under even v7x's 64 MiB VMEM.
    if tile_n is None:
        tile_n = min(2048, _round_up(max(N, 1), row_align))
    tile_n = max(row_align, _round_up(tile_n, row_align))
    n_pad = _round_up(max(N, 1), tile_n)
    grid_n = n_pad // tile_n
    n_pack = n_pad // pack
    tq = tile_n // pack

    # padded rows use token 0 (finite logits, sliced off) / target -1 (ignored)
    idx_flat = jnp.zeros((n_pad,), jnp.int32).at[:N].set(
        idx.reshape(-1).astype(jnp.int32))
    idx_pack = idx_flat.reshape(n_pack, pack)

    wt_b = (W.T + b[None, :]).astype(jnp.float32)    # pre-biased; logits row = wt_b[idx]
    wt_rep = jnp.tile(wt_b, (1, pack))               # (V, lanes), VMEM-resident

    if targets is None:
        kern = functools.partial(_bigram_logits_kernel, vocab=V, pack=pack)
        grid_spec = pltpu.PrefetchScalarGridSpec(
            num_scalar_prefetch=0,
            grid=(grid_n,),
            in_specs=[
                pl.BlockSpec((tq, pack), lambda i: (i, 0)),     # packed idx tile
                pl.BlockSpec((V, lanes), lambda i: (0, 0)),     # weights resident
            ],
            out_specs=pl.BlockSpec((tq, lanes), lambda i: (i, 0)),
        )
        cost = pl.CostEstimate(
            flops=int(3 * V * n_pad * V),
            transcendentals=0,
            bytes_accessed=int(4 * (n_pad + V * lanes + n_pad * V)),
        )
        logits_packed = pl.pallas_call(
            kern,
            out_shape=jax.ShapeDtypeStruct((n_pack, lanes), jnp.float32),
            grid_spec=grid_spec,
            compiler_params=pltpu.CompilerParams(
                dimension_semantics=("parallel",)),
            cost_estimate=cost,
        )(idx_pack, wt_rep)
        logits = logits_packed.reshape(n_pad, V)[:N].reshape(B, T, V)
        return logits, None

    tgt_flat = jnp.full((n_pad,), -1, jnp.int32).at[:N].set(
        targets.reshape(-1).astype(jnp.int32))
    tgt_pack = tgt_flat.reshape(n_pack, pack)
    valid_pack = tgt_pack >= 0
    q_off = (jnp.arange(pack, dtype=jnp.int32) * V)[None, :]
    tgt_off = jnp.where(valid_pack, tgt_pack + q_off, -1)     # lane-offset targets
    ividx_raw = jnp.where(valid_pack, idx_pack, -1)           # valid-row token ids
    wtbt = (W + b[:, None]).astype(jnp.float32)               # (V, V) = [class, token]

    kern = functools.partial(_bigram_loss_kernel, vocab=V, pack=pack)
    grid_spec = pltpu.PrefetchScalarGridSpec(
        num_scalar_prefetch=0,
        grid=(grid_n,),
        in_specs=[
            pl.BlockSpec((tq, pack), lambda i: (i, 0)),    # packed idx tile
            pl.BlockSpec((tq, pack), lambda i: (i, 0)),    # packed offset targets
            pl.BlockSpec((tq, pack), lambda i: (i, 0)),    # packed valid idx
            pl.BlockSpec((V, lanes), lambda i: (0, 0)),    # wt_rep resident
            pl.BlockSpec((V, V), lambda i: (0, 0)),        # wtbt resident
        ],
        out_specs=(
            pl.BlockSpec((tq, lanes), lambda i: (i, 0)),   # packed logits
            pl.BlockSpec((8, 128), lambda i: (i, 0)),      # per-step loss partial
        ),
    )
    cost = pl.CostEstimate(
        flops=int(3 * V * n_pad * V + 8 * n_pad * V),
        transcendentals=int(grid_n * (V * V + V)),
        bytes_accessed=int(4 * (3 * n_pad + 2 * V * lanes + n_pad * V
                                + grid_n * 8 * 128)),
    )
    logits_packed, loss_parts = pl.pallas_call(
        kern,
        out_shape=(
            jax.ShapeDtypeStruct((n_pack, lanes), jnp.float32),
            jax.ShapeDtypeStruct((grid_n * 8, 128), jnp.float32),
        ),
        grid_spec=grid_spec,
        compiler_params=pltpu.CompilerParams(
            dimension_semantics=("parallel",)),   # per-step partials -> parallel OK
        cost_estimate=cost,
    )(idx_pack, tgt_off, ividx_raw, wt_rep, wtbt)

    logits = logits_packed.reshape(n_pad, V)[:N].reshape(B, T, V)
    loss_sum = loss_parts.reshape(grid_n, 8 * 128)[:, 0].sum()
    n_valid = jnp.sum(targets.reshape(-1) != -1).astype(jnp.float32)
    # mean over non-ignored targets (NaN if all targets == -1, same as PyTorch)
    loss = loss_sum / n_valid
    return logits, loss


def _reference(idx, W, b, targets):
    """Pure-JAX reference of the PyTorch forward for a sanity check."""
    V = W.shape[0]
    xenc = jax.nn.one_hot(idx, V, dtype=jnp.float32)
    logits = xenc @ W.T + b
    logp = jax.nn.log_softmax(logits, axis=-1)
    t = targets.reshape(-1)
    valid = (t != -1)
    t_safe = jnp.where(valid, t, 0)
    picked = jnp.take_along_axis(logp.reshape(-1, V), t_safe[:, None], axis=-1)[:, 0]
    loss = -jnp.sum(picked * valid) / jnp.sum(valid)
    return logits, loss


if __name__ == "__main__":
    key = jax.random.PRNGKey(0)
    k_w, k_b, k_idx, k_tgt = jax.random.split(key, 4)

    vocab_size = 32
    B, T = 4, 21   # N = 84 -> with tile_n=32: 3 grid steps + 12 padded rows

    # deterministic parameter init (nn.Linear default: U(-1/sqrt(in), 1/sqrt(in)))
    bound = 1.0 / math.sqrt(vocab_size)
    W = jax.random.uniform(k_w, (vocab_size, vocab_size), jnp.float32, -bound, bound)
    b = jax.random.uniform(k_b, (vocab_size,), jnp.float32, -bound, bound)

    idx = jax.random.randint(k_idx, (B, T), 0, vocab_size, dtype=jnp.int32)
    targets = jax.random.randint(k_tgt, (B, T), 0, vocab_size, dtype=jnp.int32)
    # mark a few positions as ignored (ignore_index = -1)
    targets = targets.at[0, 0].set(-1).at[1, 3].set(-1).at[3, 20].set(-1)

    # training-style call (logits + loss); tile_n=32 exercises a 3-step grid
    logits, loss = bigram_forward(idx, W, b, targets, tile_n=32)
    jax.block_until_ready((logits, loss))

    # inference-style call (logits only; CE work skipped entirely), default tile
    logits_inf, loss_inf = bigram_forward(idx, W, b, None)
    jax.block_until_ready(logits_inf)

    ref_logits, ref_loss = _reference(idx, W, b, targets)
    assert np.allclose(np.asarray(logits), np.asarray(ref_logits), atol=1e-5)
    assert np.allclose(np.asarray(logits_inf), np.asarray(ref_logits), atol=1e-5)
    assert np.allclose(float(loss), float(ref_loss), atol=1e-5)
    assert loss_inf is None

    print("KERNEL_OK")
</pallas_src>

<mosaic_0001>
module attributes {stable_mosaic.version = 11 : i64} {
  func.func @_bigram_loss_kernel(%arg0: i32, %arg1: memref<8x4xi32, #tpu.memory_space<vmem>>, %arg2: memref<8x4xi32, #tpu.memory_space<vmem>>, %arg3: memref<8x4xi32, #tpu.memory_space<vmem>>, %arg4: memref<32x128xf32, #tpu.memory_space<vmem>>, %arg5: memref<32x32xf32, #tpu.memory_space<vmem>>, %arg6: memref<8x128xf32, #tpu.memory_space<vmem>>, %arg7: memref<8x128xf32, #tpu.memory_space<vmem>>) attributes {dimension_semantics = [#tpu.dimension_semantics<parallel>], iteration_bounds = array<i64: 3>, scalar_prefetch = 0 : i64, scratch_operands = 0 : i64, tpu.core_type = #tpu.core_type<tc>, window_params = [{transform_indices = @transform_0, window_bounds = array<i64: 8, 4>}, {transform_indices = @transform_1, window_bounds = array<i64: 8, 4>}, {transform_indices = @transform_2, window_bounds = array<i64: 8, 4>}, {pipeline_mode = #tpu.pipeline_mode<synchronous>, transform_indices = @transform_3, window_bounds = array<i64: 32, 128>}, {pipeline_mode = #tpu.pipeline_mode<synchronous>, transform_indices = @transform_4, window_bounds = array<i64: 32, 32>}, {transform_indices = @transform_5, window_bounds = array<i64: 8, 128>}, {transform_indices = @transform_6, window_bounds = array<i64: 8, 128>}]} {
    %0 = tpu.iota {dimensions = array<i32: 1>} : vector<8x128xi32>
    %c0 = arith.constant 0 : index
    %c0_0 = arith.constant 0 : index
    %1 = vector.load %arg1[%c0, %c0_0] : memref<8x4xi32, #tpu.memory_space<vmem>>, vector<8x4xi32>
    %c0_i32 = arith.constant 0 : i32
    %2 = vector.broadcast %c0_i32 : i32 to vector<8x128xi32>
    %c0_i32_1 = arith.constant 0 : i32
    %3 = vector.broadcast %c0_i32_1 : i32 to vector<8x128xi32>
    %4 = arith.cmpi sge, %0, %3 : vector<8x128xi32>
    %c32_i32 = arith.constant 32 : i32
    %5 = vector.broadcast %c32_i32 : i32 to vector<8x128xi32>
    %6 = arith.cmpi slt, %0, %5 : vector<8x128xi32>
    %7 = arith.andi %4, %6 : vector<8x128xi1>
    %8 = vector.extract_strided_slice %1 {offsets = [0, 0], sizes = [8, 1], strides = [1, 1]} : vector<8x4xi32> to vector<8x1xi32>
    %9 = vector.shape_cast %8 : vector<8x1xi32> to vector<8x1xi32>
    %10 = vector.broadcast %9 : vector<8x1xi32> to vector<8x128xi32>
    %11 = arith.select %7, %10, %2 : vector<8x128xi1>, vector<8x128xi32>
    %c32_i32_2 = arith.constant 32 : i32
    %12 = vector.broadcast %c32_i32_2 : i32 to vector<8x128xi32>
    %13 = arith.cmpi sge, %0, %12 : vector<8x128xi32>
    %c64_i32 = arith.constant 64 : i32
    %14 = vector.broadcast %c64_i32 : i32 to vector<8x128xi32>
    %15 = arith.cmpi slt, %0, %14 : vector<8x128xi32>
    %16 = arith.andi %13, %15 : vector<8x128xi1>
    %17 = vector.extract_strided_slice %1 {offsets = [0, 1], sizes = [8, 1], strides = [1, 1]} : vector<8x4xi32> to vector<8x1xi32>
    %18 = vector.shape_cast %17 : vector<8x1xi32> to vector<8x1xi32>
    %19 = vector.broadcast %18 : vector<8x1xi32> to vector<8x128xi32>
    %20 = arith.select %16, %19, %11 : vector<8x128xi1>, vector<8x128xi32>
    %c64_i32_3 = arith.constant 64 : i32
    %21 = vector.broadcast %c64_i32_3 : i32 to vector<8x128xi32>
    %22 = arith.cmpi sge, %0, %21 : vector<8x128xi32>
    %c96_i32 = arith.constant 96 : i32
    %23 = vector.broadcast %c96_i32 : i32 to vector<8x128xi32>
    %24 = arith.cmpi slt, %0, %23 : vector<8x128xi32>
    %25 = arith.andi %22, %24 : vector<8x128xi1>
    %26 = vector.extract_strided_slice %1 {offsets = [0, 2], sizes = [8, 1], strides = [1, 1]} : vector<8x4xi32> to vector<8x1xi32>
    %27 = vector.shape_cast %26 : vector<8x1xi32> to vector<8x1xi32>
    %28 = vector.broadcast %27 : vector<8x1xi32> to vector<8x128xi32>
    %29 = arith.select %25, %28, %20 : vector<8x128xi1>, vector<8x128xi32>
    %c96_i32_4 = arith.constant 96 : i32
    %30 = vector.broadcast %c96_i32_4 : i32 to vector<8x128xi32>
    %31 = arith.cmpi sge, %0, %30 : vector<8x128xi32>
    %c128_i32 = arith.constant 128 : i32
    %32 = vector.broadcast %c128_i32 : i32 to vector<8x128xi32>
    %33 = arith.cmpi slt, %0, %32 : vector<8x128xi32>
    %34 = arith.andi %31, %33 : vector<8x128xi1>
    %35 = vector.extract_strided_slice %1 {offsets = [0, 3], sizes = [8, 1], strides = [1, 1]} : vector<8x4xi32> to vector<8x1xi32>
    %36 = vector.shape_cast %35 : vector<8x1xi32> to vector<8x1xi32>
    %37 = vector.broadcast %36 : vector<8x1xi32> to vector<8x128xi32>
    %38 = arith.select %34, %37, %29 : vector<8x128xi1>, vector<8x128xi32>
    %cst = arith.constant 0.000000e+00 : f32
    %39 = vector.broadcast %cst : f32 to vector<8x128xf32>
    %c0_i32_5 = arith.constant 0 : i32
    %40 = vector.broadcast %c0_i32_5 : i32 to vector<8x128xi32>
    %41 = arith.cmpi eq, %38, %40 : vector<8x128xi32>
    %c0_6 = arith.constant 0 : index
    %c0_7 = arith.constant 0 : index
    %42 = vector.load %arg4[%c0_6, %c0_7] : memref<32x128xf32, #tpu.memory_space<vmem>>, vector<1x128xf32>
    %cst_8 = arith.constant 0.000000e+00 : f32
    %43 = vector.shape_cast %42 : vector<1x128xf32> to vector<1x128xf32>
    %44 = vector.broadcast %43 : vector<1x128xf32> to vector<8x128xf32>
    %45 = vector.broadcast %cst_8 : f32 to vector<8x128xf32>
    %46 = arith.select %41, %44, %45 : vector<8x128xi1>, vector<8x128xf32>
    %47 = arith.addf %39, %46 : vector<8x128xf32>
    %c1_i32 = arith.constant 1 : i32
    %48 = vector.broadcast %c1_i32 : i32 to vector<8x128xi32>
    %49 = arith.cmpi eq, %38, %48 : vector<8x128xi32>
    %c1 = arith.constant 1 : index
    %c0_9 = arith.constant 0 : index
    %50 = vector.load %arg4[%c1, %c0_9] : memref<32x128xf32, #tpu.memory_space<vmem>>, vector<1x128xf32>
    %cst_10 = arith.constant 0.000000e+00 : f32
    %51 = vector.shape_cast %50 : vector<1x128xf32> to vector<1x128xf32>
    %52 = vector.broadcast %51 : vector<1x128xf32> to vector<8x128xf32>
    %53 = vector.broadcast %cst_10 : f32 to vector<8x128xf32>
    %54 = arith.select %49, %52, %53 : vector<8x128xi1>, vector<8x128xf32>
    %55 = arith.addf %47, %54 : vector<8x128xf32>
    %c2_i32 = arith.constant 2 : i32
    %56 = vector.broadcast %c2_i32 : i32 to vector<8x128xi32>
    %57 = arith.cmpi eq, %38, %56 : vector<8x128xi32>
    %c2 = arith.constant 2 : index
    %c0_11 = arith.constant 0 : index
    %58 = vector.load %arg4[%c2, %c0_11] : memref<32x128xf32, #tpu.memory_space<vmem>>, vector<1x128xf32>
    %cst_12 = arith.constant 0.000000e+00 : f32
    %59 = vector.shape_cast %58 : vector<1x128xf32> to vector<1x128xf32>
    %60 = vector.broadcast %59 : vector<1x128xf32> to vector<8x128xf32>
    %61 = vector.broadcast %cst_12 : f32 to vector<8x128xf32>
    %62 = arith.select %57, %60, %61 : vector<8x128xi1>, vector<8x128xf32>
    %63 = arith.addf %55, %62 : vector<8x128xf32>
    %c3_i32 = arith.constant 3 : i32
    %64 = vector.broadcast %c3_i32 : i32 to vector<8x128xi32>
    %65 = arith.cmpi eq, %38, %64 : vector<8x128xi32>
    %c3 = arith.constant 3 : index
    %c0_13 = arith.constant 0 : index
    %66 = vector.load %arg4[%c3, %c0_13] : memref<32x128xf32, #tpu.memory_space<vmem>>, vector<1x128xf32>
    %cst_14 = arith.constant 0.000000e+00 : f32
    %67 = vector.shape_cast %66 : vector<1x128xf32> to vector<1x128xf32>
    %68 = vector.broadcast %67 : vector<1x128xf32> to vector<8x128xf32>
    %69 = vector.broadcast %cst_14 : f32 to vector<8x128xf32>
    %70 = arith.select %65, %68, %69 : vector<8x128xi1>, vector<8x128xf32>
    %71 = arith.addf %63, %70 : vector<8x128xf32>
    %c4_i32 = arith.constant 4 : i32
    %72 = vector.broadcast %c4_i32 : i32 to vector<8x128xi32>
    %73 = arith.cmpi eq, %38, %72 : vector<8x128xi32>
    %c4 = arith.constant 4 : index
    %c0_15 = arith.constant 0 : index
    %74 = vector.load %arg4[%c4, %c0_15] : memref<32x128xf32, #tpu.memory_space<vmem>>, vector<1x128xf32>
    %cst_16 = arith.constant 0.000000e+00 : f32
    %75 = vector.shape_cast %74 : vector<1x128xf32> to vector<1x128xf32>
    %76 = vector.broadcast %75 : vector<1x128xf32> to vector<8x128xf32>
    %77 = vector.broadcast %cst_16 : f32 to vector<8x128xf32>
    %78 = arith.select %73, %76, %77 : vector<8x128xi1>, vector<8x128xf32>
    %79 = arith.addf %71, %78 : vector<8x128xf32>
    %c5_i32 = arith.constant 5 : i32
    %80 = vector.broadcast %c5_i32 : i32 to vector<8x128xi32>
    %81 = arith.cmpi eq, %38, %80 : vector<8x128xi32>
    %c5 = arith.constant 5 : index
    %c0_17 = arith.constant 0 : index
    %82 = vector.load %arg4[%c5, %c0_17] : memref<32x128xf32, #tpu.memory_space<vmem>>, vector<1x128xf32>
    %cst_18 = arith.constant 0.000000e+00 : f32
    %83 = vector.shape_cast %82 : vector<1x128xf32> to vector<1x128xf32>
    %84 = vector.broadcast %83 : vector<1x128xf32> to vector<8x128xf32>
    %85 = vector.broadcast %cst_18 : f32 to vector<8x128xf32>
    %86 = arith.select %81, %84, %85 : vector<8x128xi1>, vector<8x128xf32>
    %87 = arith.addf %79, %86 : vector<8x128xf32>
    %c6_i32 = arith.constant 6 : i32
    %88 = vector.broadcast %c6_i32 : i32 to vector<8x128xi32>
    %89 = arith.cmpi eq, %38, %88 : vector<8x128xi32>
    %c6 = arith.constant 6 : index
    %c0_19 = arith.constant 0 : index
    %90 = vector.load %arg4[%c6, %c0_19] : memref<32x128xf32, #tpu.memory_space<vmem>>, vector<1x128xf32>
    %cst_20 = arith.constant 0.000000e+00 : f32
    %91 = vector.shape_cast %90 : vector<1x128xf32> to vector<1x128xf32>
    %92 = vector.broadcast %91 : vector<1x128xf32> to vector<8x128xf32>
    %93 = vector.broadcast %cst_20 : f32 to vector<8x128xf32>
    %94 = arith.select %89, %92, %93 : vector<8x128xi1>, vector<8x128xf32>
    %95 = arith.addf %87, %94 : vector<8x128xf32>
    %c7_i32 = arith.constant 7 : i32
    %96 = vector.broadcast %c7_i32 : i32 to vector<8x128xi32>
    %97 = arith.cmpi eq, %38, %96 : vector<8x128xi32>
    %c7 = arith.constant 7 : index
    %c0_21 = arith.constant 0 : index
    %98 = vector.load %arg4[%c7, %c0_21] : memref<32x128xf32, #tpu.memory_space<vmem>>, vector<1x128xf32>
    %cst_22 = arith.constant 0.000000e+00 : f32
    %99 = vector.shape_cast %98 : vector<1x128xf32> to vector<1x128xf32>
    %100 = vector.broadcast %99 : vector<1x128xf32> to vector<8x128xf32>
    %101 = vector.broadcast %cst_22 : f32 to vector<8x128xf32>
    %102 = arith.select %97, %100, %101 : vector<8x128xi1>, vector<8x128xf32>
    %103 = arith.addf %95, %102 : vector<8x128xf32>
    %c8_i32 = arith.constant 8 : i32
    %104 = vector.broadcast %c8_i32 : i32 to vector<8x128xi32>
    %105 = arith.cmpi eq, %38, %104 : vector<8x128xi32>
    %c8 = arith.constant 8 : index
    %c0_23 = arith.constant 0 : index
    %106 = vector.load %arg4[%c8, %c0_23] : memref<32x128xf32, #tpu.memory_space<vmem>>, vector<1x128xf32>
    %cst_24 = arith.constant 0.000000e+00 : f32
    %107 = vector.shape_cast %106 : vector<1x128xf32> to vector<1x128xf32>
    %108 = vector.broadcast %107 : vector<1x128xf32> to vector<8x128xf32>
    %109 = vector.broadcast %cst_24 : f32 to vector<8x128xf32>
    %110 = arith.select %105, %108, %109 : vector<8x128xi1>, vector<8x128xf32>
    %111 = arith.addf %103, %110 : vector<8x128xf32>
    %c9_i32 = arith.constant 9 : i32
    %112 = vector.broadcast %c9_i32 : i32 to vector<8x128xi32>
    %113 = arith.cmpi eq, %38, %112 : vector<8x128xi32>
    %c9 = arith.constant 9 : index
    %c0_25 = arith.constant 0 : index
    %114 = vector.load %arg4[%c9, %c0_25] : memref<32x128xf32, #tpu.memory_space<vmem>>, vector<1x128xf32>
    %cst_26 = arith.constant 0.000000e+00 : f32
    %115 = vector.shape_cast %114 : vector<1x128xf32> to vector<1x128xf32>
    %116 = vector.broadcast %115 : vector<1x128xf32> to vector<8x128xf32>
    %117 = vector.broadcast %cst_26 : f32 to vector<8x128xf32>
    %118 = arith.select %113, %116, %117 : vector<8x128xi1>, vector<8x128xf32>
    %119 = arith.addf %111, %118 : vector<8x128xf32>
    %c10_i32 = arith.constant 10 : i32
    %120 = vector.broadcast %c10_i32 : i32 to vector<8x128xi32>
    %121 = arith.cmpi eq, %38, %120 : vector<8x128xi32>
    %c10 = arith.constant 10 : index
    %c0_27 = arith.constant 0 : index
    %122 = vector.load %arg4[%c10, %c0_27] : memref<32x128xf32, #tpu.memory_space<vmem>>, vector<1x128xf32>
    %cst_28 = arith.constant 0.000000e+00 : f32
    %123 = vector.shape_cast %122 : vector<1x128xf32> to vector<1x128xf32>
    %124 = vector.broadcast %123 : vector<1x128xf32> to vector<8x128xf32>
    %125 = vector.broadcast %cst_28 : f32 to vector<8x128xf32>
    %126 = arith.select %121, %124, %125 : vector<8x128xi1>, vector<8x128xf32>
    %127 = arith.addf %119, %126 : vector<8x128xf32>
    %c11_i32 = arith.constant 11 : i32
    %128 = vector.broadcast %c11_i32 : i32 to vector<8x128xi32>
    %129 = arith.cmpi eq, %38, %128 : vector<8x128xi32>
    %c11 = arith.constant 11 : index
    %c0_29 = arith.constant 0 : index
    %130 = vector.load %arg4[%c11, %c0_29] : memref<32x128xf32, #tpu.memory_space<vmem>>, vector<1x128xf32>
    %cst_30 = arith.constant 0.000000e+00 : f32
    %131 = vector.shape_cast %130 : vector<1x128xf32> to vector<1x128xf32>
    %132 = vector.broadcast %131 : vector<1x128xf32> to vector<8x128xf32>
    %133 = vector.broadcast %cst_30 : f32 to vector<8x128xf32>
    %134 = arith.select %129, %132, %133 : vector<8x128xi1>, vector<8x128xf32>
    %135 = arith.addf %127, %134 : vector<8x128xf32>
    %c12_i32 = arith.constant 12 : i32
    %136 = vector.broadcast %c12_i32 : i32 to vector<8x128xi32>
    %137 = arith.cmpi eq, %38, %136 : vector<8x128xi32>
    %c12 = arith.constant 12 : index
    %c0_31 = arith.constant 0 : index
    %138 = vector.load %arg4[%c12, %c0_31] : memref<32x128xf32, #tpu.memory_space<vmem>>, vector<1x128xf32>
    %cst_32 = arith.constant 0.000000e+00 : f32
    %139 = vector.shape_cast %138 : vector<1x128xf32> to vector<1x128xf32>
    %140 = vector.broadcast %139 : vector<1x128xf32> to vector<8x128xf32>
    %141 = vector.broadcast %cst_32 : f32 to vector<8x128xf32>
    %142 = arith.select %137, %140, %141 : vector<8x128xi1>, vector<8x128xf32>
    %143 = arith.addf %135, %142 : vector<8x128xf32>
    %c13_i32 = arith.constant 13 : i32
    %144 = vector.broadcast %c13_i32 : i32 to vector<8x128xi32>
    %145 = arith.cmpi eq, %38, %144 : vector<8x128xi32>
    %c13 = arith.constant 13 : index
    %c0_33 = arith.constant 0 : index
    %146 = vector.load %arg4[%c13, %c0_33] : memref<32x128xf32, #tpu.memory_space<vmem>>, vector<1x128xf32>
    %cst_34 = arith.constant 0.000000e+00 : f32
    %147 = vector.shape_cast %146 : vector<1x128xf32> to vector<1x128xf32>
    %148 = vector.broadcast %147 : vector<1x128xf32> to vector<8x128xf32>
    %149 = vector.broadcast %cst_34 : f32 to vector<8x128xf32>
    %150 = arith.select %145, %148, %149 : vector<8x128xi1>, vector<8x128xf32>
    %151 = arith.addf %143, %150 : vector<8x128xf32>
    %c14_i32 = arith.constant 14 : i32
    %152 = vector.broadcast %c14_i32 : i32 to vector<8x128xi32>
    %153 = arith.cmpi eq, %38, %152 : vector<8x128xi32>
    %c14 = arith.constant 14 : index
    %c0_35 = arith.constant 0 : index
    %154 = vector.load %arg4[%c14, %c0_35] : memref<32x128xf32, #tpu.memory_space<vmem>>, vector<1x128xf32>
    %cst_36 = arith.constant 0.000000e+00 : f32
    %155 = vector.shape_cast %154 : vector<1x128xf32> to vector<1x128xf32>
    %156 = vector.broadcast %155 : vector<1x128xf32> to vector<8x128xf32>
    %157 = vector.broadcast %cst_36 : f32 to vector<8x128xf32>
    %158 = arith.select %153, %156, %157 : vector<8x128xi1>, vector<8x128xf32>
    %159 = arith.addf %151, %158 : vector<8x128xf32>
    %c15_i32 = arith.constant 15 : i32
    %160 = vector.broadcast %c15_i32 : i32 to vector<8x128xi32>
    %161 = arith.cmpi eq, %38, %160 : vector<8x128xi32>
    %c15 = arith.constant 15 : index
    %c0_37 = arith.constant 0 : index
    %162 = vector.load %arg4[%c15, %c0_37] : memref<32x128xf32, #tpu.memory_space<vmem>>, vector<1x128xf32>
    %cst_38 = arith.constant 0.000000e+00 : f32
    %163 = vector.shape_cast %162 : vector<1x128xf32> to vector<1x128xf32>
    %164 = vector.broadcast %163 : vector<1x128xf32> to vector<8x128xf32>
    %165 = vector.broadcast %cst_38 : f32 to vector<8x128xf32>
    %166 = arith.select %161, %164, %165 : vector<8x128xi1>, vector<8x128xf32>
    %167 = arith.addf %159, %166 : vector<8x128xf32>
    %c16_i32 = arith.constant 16 : i32
    %168 = vector.broadcast %c16_i32 : i32 to vector<8x128xi32>
    %169 = arith.cmpi eq, %38, %168 : vector<8x128xi32>
    %c16 = arith.constant 16 : index
    %c0_39 = arith.constant 0 : index
    %170 = vector.load %arg4[%c16, %c0_39] : memref<32x128xf32, #tpu.memory_space<vmem>>, vector<1x128xf32>
    %cst_40 = arith.constant 0.000000e+00 : f32
    %171 = vector.shape_cast %170 : vector<1x128xf32> to vector<1x128xf32>
    %172 = vector.broadcast %171 : vector<1x128xf32> to vector<8x128xf32>
    %173 = vector.broadcast %cst_40 : f32 to vector<8x128xf32>
    %174 = arith.select %169, %172, %173 : vector<8x128xi1>, vector<8x128xf32>
    %175 = arith.addf %167, %174 : vector<8x128xf32>
    %c17_i32 = arith.constant 17 : i32
    %176 = vector.broadcast %c17_i32 : i32 to vector<8x128xi32>
    %177 = arith.cmpi eq, %38, %176 : vector<8x128xi32>
    %c17 = arith.constant 17 : index
    %c0_41 = arith.constant 0 : index
    %178 = vector.load %arg4[%c17, %c0_41] : memref<32x128xf32, #tpu.memory_space<vmem>>, vector<1x128xf32>
    %cst_42 = arith.constant 0.000000e+00 : f32
    %179 = vector.shape_cast %178 : vector<1x128xf32> to vector<1x128xf32>
    %180 = vector.broadcast %179 : vector<1x128xf32> to vector<8x128xf32>
    %181 = vector.broadcast %cst_42 : f32 to vector<8x128xf32>
    %182 = arith.select %177, %180, %181 : vector<8x128xi1>, vector<8x128xf32>
    %183 = arith.addf %175, %182 : vector<8x128xf32>
    %c18_i32 = arith.constant 18 : i32
    %184 = vector.broadcast %c18_i32 : i32 to vector<8x128xi32>
    %185 = arith.cmpi eq, %38, %184 : vector<8x128xi32>
    %c18 = arith.constant 18 : index
    %c0_43 = arith.constant 0 : index
    %186 = vector.load %arg4[%c18, %c0_43] : memref<32x128xf32, #tpu.memory_space<vmem>>, vector<1x128xf32>
    %cst_44 = arith.constant 0.000000e+00 : f32
    %187 = vector.shape_cast %186 : vector<1x128xf32> to vector<1x128xf32>
    %188 = vector.broadcast %187 : vector<1x128xf32> to vector<8x128xf32>
    %189 = vector.broadcast %cst_44 : f32 to vector<8x128xf32>
    %190 = arith.select %185, %188, %189 : vector<8x128xi1>, vector<8x128xf32>
    %191 = arith.addf %183, %190 : vector<8x128xf32>
    %c19_i32 = arith.constant 19 : i32
    %192 = vector.broadcast %c19_i32 : i32 to vector<8x128xi32>
    %193 = arith.cmpi eq, %38, %192 : vector<8x128xi32>
    %c19 = arith.constant 19 : index
    %c0_45 = arith.constant 0 : index
    %194 = vector.load %arg4[%c19, %c0_45] : memref<32x128xf32, #tpu.memory_space<vmem>>, vector<1x128xf32>
    %cst_46 = arith.constant 0.000000e+00 : f32
    %195 = vector.shape_cast %194 : vector<1x128xf32> to vector<1x128xf32>
    %196 = vector.broadcast %195 : vector<1x128xf32> to vector<8x128xf32>
    %197 = vector.broadcast %cst_46 : f32 to vector<8x128xf32>
    %198 = arith.select %193, %196, %197 : vector<8x128xi1>, vector<8x128xf32>
    %199 = arith.addf %191, %198 : vector<8x128xf32>
    %c20_i32 = arith.constant 20 : i32
    %200 = vector.broadcast %c20_i32 : i32 to vector<8x128xi32>
    %201 = arith.cmpi eq, %38, %200 : vector<8x128xi32>
    %c20 = arith.constant 20 : index
    %c0_47 = arith.constant 0 : index
    %202 = vector.load %arg4[%c20, %c0_47] : memref<32x128xf32, #tpu.memory_space<vmem>>, vector<1x128xf32>
    %cst_48 = arith.constant 0.000000e+00 : f32
    %203 = vector.shape_cast %202 : vector<1x128xf32> to vector<1x128xf32>
    %204 = vector.broadcast %203 : vector<1x128xf32> to vector<8x128xf32>
    %205 = vector.broadcast %cst_48 : f32 to vector<8x128xf32>
    %206 = arith.select %201, %204, %205 : vector<8x128xi1>, vector<8x128xf32>
    %207 = arith.addf %199, %206 : vector<8x128xf32>
    %c21_i32 = arith.constant 21 : i32
    %208 = vector.broadcast %c21_i32 : i32 to vector<8x128xi32>
    %209 = arith.cmpi eq, %38, %208 : vector<8x128xi32>
    %c21 = arith.constant 21 : index
    %c0_49 = arith.constant 0 : index
    %210 = vector.load %arg4[%c21, %c0_49] : memref<32x128xf32, #tpu.memory_space<vmem>>, vector<1x128xf32>
    %cst_50 = arith.constant 0.000000e+00 : f32
    %211 = vector.shape_cast %210 : vector<1x128xf32> to vector<1x128xf32>
    %212 = vector.broadcast %211 : vector<1x128xf32> to vector<8x128xf32>
    %213 = vector.broadcast %cst_50 : f32 to vector<8x128xf32>
    %214 = arith.select %209, %212, %213 : vector<8x128xi1>, vector<8x128xf32>
    %215 = arith.addf %207, %214 : vector<8x128xf32>
    %c22_i32 = arith.constant 22 : i32
    %216 = vector.broadcast %c22_i32 : i32 to vector<8x128xi32>
    %217 = arith.cmpi eq, %38, %216 : vector<8x128xi32>
    %c22 = arith.constant 22 : index
    %c0_51 = arith.constant 0 : index
    %218 = vector.load %arg4[%c22, %c0_51] : memref<32x128xf32, #tpu.memory_space<vmem>>, vector<1x128xf32>
    %cst_52 = arith.constant 0.000000e+00 : f32
    %219 = vector.shape_cast %218 : vector<1x128xf32> to vector<1x128xf32>
    %220 = vector.broadcast %219 : vector<1x128xf32> to vector<8x128xf32>
    %221 = vector.broadcast %cst_52 : f32 to vector<8x128xf32>
    %222 = arith.select %217, %220, %221 : vector<8x128xi1>, vector<8x128xf32>
    %223 = arith.addf %215, %222 : vector<8x128xf32>
    %c23_i32 = arith.constant 23 : i32
    %224 = vector.broadcast %c23_i32 : i32 to vector<8x128xi32>
    %225 = arith.cmpi eq, %38, %224 : vector<8x128xi32>
    %c23 = arith.constant 23 : index
    %c0_53 = arith.constant 0 : index
    %226 = vector.load %arg4[%c23, %c0_53] : memref<32x128xf32, #tpu.memory_space<vmem>>, vector<1x128xf32>
    %cst_54 = arith.constant 0.000000e+00 : f32
    %227 = vector.shape_cast %226 : vector<1x128xf32> to vector<1x128xf32>
    %228 = vector.broadcast %227 : vector<1x128xf32> to vector<8x128xf32>
    %229 = vector.broadcast %cst_54 : f32 to vector<8x128xf32>
    %230 = arith.select %225, %228, %229 : vector<8x128xi1>, vector<8x128xf32>
    %231 = arith.addf %223, %230 : vector<8x128xf32>
    %c24_i32 = arith.constant 24 : i32
    %232 = vector.broadcast %c24_i32 : i32 to vector<8x128xi32>
    %233 = arith.cmpi eq, %38, %232 : vector<8x128xi32>
    %c24 = arith.constant 24 : index
    %c0_55 = arith.constant 0 : index
    %234 = vector.load %arg4[%c24, %c0_55] : memref<32x128xf32, #tpu.memory_space<vmem>>, vector<1x128xf32>
    %cst_56 = arith.constant 0.000000e+00 : f32
    %235 = vector.shape_cast %234 : vector<1x128xf32> to vector<1x128xf32>
    %236 = vector.broadcast %235 : vector<1x128xf32> to vector<8x128xf32>
    %237 = vector.broadcast %cst_56 : f32 to vector<8x128xf32>
    %238 = arith.select %233, %236, %237 : vector<8x128xi1>, vector<8x128xf32>
    %239 = arith.addf %231, %238 : vector<8x128xf32>
    %c25_i32 = arith.constant 25 : i32
    %240 = vector.broadcast %c25_i32 : i32 to vector<8x128xi32>
    %241 = arith.cmpi eq, %38, %240 : vector<8x128xi32>
    %c25 = arith.constant 25 : index
    %c0_57 = arith.constant 0 : index
    %242 = vector.load %arg4[%c25, %c0_57] : memref<32x128xf32, #tpu.memory_space<vmem>>, vector<1x128xf32>
    %cst_58 = arith.constant 0.000000e+00 : f32
    %243 = vector.shape_cast %242 : vector<1x128xf32> to vector<1x128xf32>
    %244 = vector.broadcast %243 : vector<1x128xf32> to vector<8x128xf32>
    %245 = vector.broadcast %cst_58 : f32 to vector<8x128xf32>
    %246 = arith.select %241, %244, %245 : vector<8x128xi1>, vector<8x128xf32>
    %247 = arith.addf %239, %246 : vector<8x128xf32>
    %c26_i32 = arith.constant 26 : i32
    %248 = vector.broadcast %c26_i32 : i32 to vector<8x128xi32>
    %249 = arith.cmpi eq, %38, %248 : vector<8x128xi32>
    %c26 = arith.constant 26 : index
    %c0_59 = arith.constant 0 : index
    %250 = vector.load %arg4[%c26, %c0_59] : memref<32x128xf32, #tpu.memory_space<vmem>>, vector<1x128xf32>
    %cst_60 = arith.constant 0.000000e+00 : f32
    %251 = vector.shape_cast %250 : vector<1x128xf32> to vector<1x128xf32>
    %252 = vector.broadcast %251 : vector<1x128xf32> to vector<8x128xf32>
    %253 = vector.broadcast %cst_60 : f32 to vector<8x128xf32>
    %254 = arith.select %249, %252, %253 : vector<8x128xi1>, vector<8x128xf32>
    %255 = arith.addf %247, %254 : vector<8x128xf32>
    %c27_i32 = arith.constant 27 : i32
    %256 = vector.broadcast %c27_i32 : i32 to vector<8x128xi32>
    %257 = arith.cmpi eq, %38, %256 : vector<8x128xi32>
    %c27 = arith.constant 27 : index
    %c0_61 = arith.constant 0 : index
    %258 = vector.load %arg4[%c27, %c0_61] : memref<32x128xf32, #tpu.memory_space<vmem>>, vector<1x128xf32>
    %cst_62 = arith.constant 0.000000e+00 : f32
    %259 = vector.shape_cast %258 : vector<1x128xf32> to vector<1x128xf32>
    %260 = vector.broadcast %259 : vector<1x128xf32> to vector<8x128xf32>
    %261 = vector.broadcast %cst_62 : f32 to vector<8x128xf32>
    %262 = arith.select %257, %260, %261 : vector<8x128xi1>, vector<8x128xf32>
    %263 = arith.addf %255, %262 : vector<8x128xf32>
    %c28_i32 = arith.constant 28 : i32
    %264 = vector.broadcast %c28_i32 : i32 to vector<8x128xi32>
    %265 = arith.cmpi eq, %38, %264 : vector<8x128xi32>
    %c28 = arith.constant 28 : index
    %c0_63 = arith.constant 0 : index
    %266 = vector.load %arg4[%c28, %c0_63] : memref<32x128xf32, #tpu.memory_space<vmem>>, vector<1x128xf32>
    %cst_64 = arith.constant 0.000000e+00 : f32
    %267 = vector.shape_cast %266 : vector<1x128xf32> to vector<1x128xf32>
    %268 = vector.broadcast %267 : vector<1x128xf32> to vector<8x128xf32>
    %269 = vector.broadcast %cst_64 : f32 to vector<8x128xf32>
    %270 = arith.select %265, %268, %269 : vector<8x128xi1>, vector<8x128xf32>
    %271 = arith.addf %263, %270 : vector<8x128xf32>
    %c29_i32 = arith.constant 29 : i32
    %272 = vector.broadcast %c29_i32 : i32 to vector<8x128xi32>
    %273 = arith.cmpi eq, %38, %272 : vector<8x128xi32>
    %c29 = arith.constant 29 : index
    %c0_65 = arith.constant 0 : index
    %274 = vector.load %arg4[%c29, %c0_65] : memref<32x128xf32, #tpu.memory_space<vmem>>, vector<1x128xf32>
    %cst_66 = arith.constant 0.000000e+00 : f32
    %275 = vector.shape_cast %274 : vector<1x128xf32> to vector<1x128xf32>
    %276 = vector.broadcast %275 : vector<1x128xf32> to vector<8x128xf32>
    %277 = vector.broadcast %cst_66 : f32 to vector<8x128xf32>
    %278 = arith.select %273, %276, %277 : vector<8x128xi1>, vector<8x128xf32>
    %279 = arith.addf %271, %278 : vector<8x128xf32>
    %c30_i32 = arith.constant 30 : i32
    %280 = vector.broadcast %c30_i32 : i32 to vector<8x128xi32>
    %281 = arith.cmpi eq, %38, %280 : vector<8x128xi32>
    %c30 = arith.constant 30 : index
    %c0_67 = arith.constant 0 : index
    %282 = vector.load %arg4[%c30, %c0_67] : memref<32x128xf32, #tpu.memory_space<vmem>>, vector<1x128xf32>
    %cst_68 = arith.constant 0.000000e+00 : f32
    %283 = vector.shape_cast %282 : vector<1x128xf32> to vector<1x128xf32>
    %284 = vector.broadcast %283 : vector<1x128xf32> to vector<8x128xf32>
    %285 = vector.broadcast %cst_68 : f32 to vector<8x128xf32>
    %286 = arith.select %281, %284, %285 : vector<8x128xi1>, vector<8x128xf32>
    %287 = arith.addf %279, %286 : vector<8x128xf32>
    %c31_i32 = arith.constant 31 : i32
    %288 = vector.broadcast %c31_i32 : i32 to vector<8x128xi32>
    %289 = arith.cmpi eq, %38, %288 : vector<8x128xi32>
    %c31 = arith.constant 31 : index
    %c0_69 = arith.constant 0 : index
    %290 = vector.load %arg4[%c31, %c0_69] : memref<32x128xf32, #tpu.memory_space<vmem>>, vector<1x128xf32>
    %cst_70 = arith.constant 0.000000e+00 : f32
    %291 = vector.shape_cast %290 : vector<1x128xf32> to vector<1x128xf32>
    %292 = vector.broadcast %291 : vector<1x128xf32> to vector<8x128xf32>
    %293 = vector.broadcast %cst_70 : f32 to vector<8x128xf32>
    %294 = arith.select %289, %292, %293 : vector<8x128xi1>, vector<8x128xf32>
    %295 = arith.addf %287, %294 : vector<8x128xf32>
    %c0_71 = arith.constant 0 : index
    %c0_72 = arith.constant 0 : index
    %296 = vector.load %arg6[%c0_71, %c0_72] : memref<8x128xf32, #tpu.memory_space<vmem>>, vector<8x128xf32>
    tpu.vector_store %arg6[%c0_71, %c0_72], %295 {strides = array<i32>} : memref<8x128xf32, #tpu.memory_space<vmem>>, vector<8x128xf32>,
    %c0_73 = arith.constant 0 : index
    %c0_74 = arith.constant 0 : index
    %297 = vector.load %arg2[%c0_73, %c0_74] : memref<8x4xi32, #tpu.memory_space<vmem>>, vector<8x4xi32>
    %cst_75 = arith.constant 0.000000e+00 : f32
    %298 = vector.broadcast %cst_75 : f32 to vector<8x128xf32>
    %299 = vector.extract_strided_slice %297 {offsets = [0, 0], sizes = [8, 1], strides = [1, 1]} : vector<8x4xi32> to vector<8x1xi32>
    %300 = vector.broadcast %299 : vector<8x1xi32> to vector<8x128xi32>
    %301 = arith.cmpi eq, %0, %300 : vector<8x128xi32>
    %302 = arith.extui %301 : vector<8x128xi1> to vector<8x128xi32>
    %303 = arith.sitofp %302 : vector<8x128xi32> to vector<8x128xf32>
    %304 = arith.addf %298, %303 : vector<8x128xf32>
    %305 = vector.extract_strided_slice %297 {offsets = [0, 1], sizes = [8, 1], strides = [1, 1]} : vector<8x4xi32> to vector<8x1xi32>
    %306 = vector.broadcast %305 : vector<8x1xi32> to vector<8x128xi32>
    %307 = arith.cmpi eq, %0, %306 : vector<8x128xi32>
    %308 = arith.extui %307 : vector<8x128xi1> to vector<8x128xi32>
    %309 = arith.sitofp %308 : vector<8x128xi32> to vector<8x128xf32>
    %310 = arith.addf %304, %309 : vector<8x128xf32>
    %311 = vector.extract_strided_slice %297 {offsets = [0, 2], sizes = [8, 1], strides = [1, 1]} : vector<8x4xi32> to vector<8x1xi32>
    %312 = vector.broadcast %311 : vector<8x1xi32> to vector<8x128xi32>
    %313 = arith.cmpi eq, %0, %312 : vector<8x128xi32>
    %314 = arith.extui %313 : vector<8x128xi1> to vector<8x128xi32>
    %315 = arith.sitofp %314 : vector<8x128xi32> to vector<8x128xf32>
    %316 = arith.addf %310, %315 : vector<8x128xf32>
    %317 = vector.extract_strided_slice %297 {offsets = [0, 3], sizes = [8, 1], strides = [1, 1]} : vector<8x4xi32> to vector<8x1xi32>
    %318 = vector.broadcast %317 : vector<8x1xi32> to vector<8x128xi32>
    %319 = arith.cmpi eq, %0, %318 : vector<8x128xi32>
    %320 = arith.extui %319 : vector<8x128xi1> to vector<8x128xi32>
    %321 = arith.sitofp %320 : vector<8x128xi32> to vector<8x128xf32>
    %322 = arith.addf %316, %321 : vector<8x128xf32>
    %323 = tpu.iota {dimensions = array<i32: 1>} : vector<8x32xi32>
    %c0_76 = arith.constant 0 : index
    %c0_77 = arith.constant 0 : index
    %324 = vector.load %arg3[%c0_76, %c0_77] : memref<8x4xi32, #tpu.memory_space<vmem>>, vector<8x4xi32>
    %cst_78 = arith.constant 0.000000e+00 : f32
    %325 = vector.broadcast %cst_78 : f32 to vector<8x32xf32>
    %326 = vector.extract_strided_slice %324 {offsets = [0, 0], sizes = [8, 1], strides = [1, 1]} : vector<8x4xi32> to vector<8x1xi32>
    %327 = vector.broadcast %326 : vector<8x1xi32> to vector<8x32xi32>
    %328 = arith.cmpi eq, %323, %327 : vector<8x32xi32>
    %329 = arith.extui %328 : vector<8x32xi1> to vector<8x32xi32>
    %330 = arith.sitofp %329 : vector<8x32xi32> to vector<8x32xf32>
    %331 = arith.addf %325, %330 : vector<8x32xf32>
    %332 = vector.extract_strided_slice %324 {offsets = [0, 1], sizes = [8, 1], strides = [1, 1]} : vector<8x4xi32> to vector<8x1xi32>
    %333 = vector.broadcast %332 : vector<8x1xi32> to vector<8x32xi32>
    %334 = arith.cmpi eq, %323, %333 : vector<8x32xi32>
    %335 = arith.extui %334 : vector<8x32xi1> to vector<8x32xi32>
    %336 = arith.sitofp %335 : vector<8x32xi32> to vector<8x32xf32>
    %337 = arith.addf %331, %336 : vector<8x32xf32>
    %338 = vector.extract_strided_slice %324 {offsets = [0, 2], sizes = [8, 1], strides = [1, 1]} : vector<8x4xi32> to vector<8x1xi32>
    %339 = vector.broadcast %338 : vector<8x1xi32> to vector<8x32xi32>
    %340 = arith.cmpi eq, %323, %339 : vector<8x32xi32>
    %341 = arith.extui %340 : vector<8x32xi1> to vector<8x32xi32>
    %342 = arith.sitofp %341 : vector<8x32xi32> to vector<8x32xf32>
    %343 = arith.addf %337, %342 : vector<8x32xf32>
    %344 = vector.extract_strided_slice %324 {offsets = [0, 3], sizes = [8, 1], strides = [1, 1]} : vector<8x4xi32> to vector<8x1xi32>
    %345 = vector.broadcast %344 : vector<8x1xi32> to vector<8x32xi32>
    %346 = arith.cmpi eq, %323, %345 : vector<8x32xi32>
    %347 = arith.extui %346 : vector<8x32xi1> to vector<8x32xi32>
    %348 = arith.sitofp %347 : vector<8x32xi32> to vector<8x32xf32>
    %349 = arith.addf %343, %348 : vector<8x32xf32>
    %c0_79 = arith.constant 0 : index
    %c0_80 = arith.constant 0 : index
    %350 = vector.load %arg5[%c0_79, %c0_80] : memref<32x32xf32, #tpu.memory_space<vmem>>, vector<32x32xf32>
    %cst_81 = arith.constant dense<0xFF800000> : vector<32xf32>
    %351 = vector.multi_reduction <maximumf>, %350, %cst_81 [0] : vector<32x32xf32> to vector<32xf32>
    %352 = vector.shape_cast %351 : vector<32xf32> to vector<1x32xf32>
    %353 = vector.broadcast %352 : vector<1x32xf32> to vector<32x32xf32>
    %354 = arith.subf %350, %353 : vector<32x32xf32>
    %355 = math.exp %354 : vector<32x32xf32>
    %cst_82 = arith.constant dense<0.000000e+00> : vector<32xf32>
    %356 = vector.multi_reduction <add>, %355, %cst_82 [0] : vector<32x32xf32> to vector<32xf32>
    %357 = vector.shape_cast %356 : vector<32xf32> to vector<1x32xf32>
    %358 = math.log %357 : vector<1x32xf32>
    %359 = arith.addf %352, %358 : vector<1x32xf32>
    %360 = vector.broadcast %359 : vector<1x32xf32> to vector<8x32xf32>
    %361 = arith.mulf %349, %360 : vector<8x32xf32>
    %362 = vector.shape_cast %361 : vector<8x32xf32> to vector<1x8x32xf32>
    %cst_83 = arith.constant dense<0.000000e+00> : vector<1xf32>
    %363 = vector.multi_reduction <add>, %362, %cst_83 [1, 2] : vector<1x8x32xf32> to vector<1xf32>
    %364 = vector.shape_cast %363 : vector<1xf32> to vector<1x1x1xf32>
    %365 = vector.extract %364[0, 0, 0] : f32 from vector<1x1x1xf32>
    %366 = arith.mulf %322, %295 : vector<8x128xf32>
    %367 = vector.shape_cast %366 : vector<8x128xf32> to vector<1x8x128xf32>
    %cst_84 = arith.constant dense<0.000000e+00> : vector<1xf32>
    %368 = vector.multi_reduction <add>, %367, %cst_84 [1, 2] : vector<1x8x128xf32> to vector<1xf32>
    %369 = vector.shape_cast %368 : vector<1xf32> to vector<1x1x1xf32>
    %370 = vector.extract %369[0, 0, 0] : f32 from vector<1x1x1xf32>
    %371 = arith.subf %365, %370 : f32
    %cst_85 = arith.constant 0.000000e+00 : f32
    %372 = vector.broadcast %cst_85 : f32 to vector<8x128xf32>
    %373 = vector.broadcast %371 : f32 to vector<8x128xf32>
    %374 = arith.addf %372, %373 : vector<8x128xf32>
    %c0_86 = arith.constant 0 : index
    %c0_87 = arith.constant 0 : index
    %375 = vector.load %arg7[%c0_86, %c0_87] : memref<8x128xf32, #tpu.memory_space<vmem>>, vector<8x128xf32>
    tpu.vector_store %arg7[%c0_86, %c0_87], %374 {strides = array<i32>} : memref<8x128xf32, #tpu.memory_space<vmem>>, vector<8x128xf32>,
    return
  }
  func.func @transform_0(%arg0: i32) -> (i32, i32) {
    %c0_i32 = arith.constant 0 : i32
    %c0_i32_0 = arith.constant 0 : i32
    return %arg0, %c0_i32 : i32, i32
  }
  func.func @transform_1(%arg0: i32) -> (i32, i32) {
    %c0_i32 = arith.constant 0 : i32
    %c0_i32_0 = arith.constant 0 : i32
    return %arg0, %c0_i32 : i32, i32
  }
  func.func @transform_2(%arg0: i32) -> (i32, i32) {
    %c0_i32 = arith.constant 0 : i32
    %c0_i32_0 = arith.constant 0 : i32
    return %arg0, %c0_i32 : i32, i32
  }
  func.func @transform_3(%arg0: i32) -> (i32, i32) {
    %c0_i32 = arith.constant 0 : i32
    %c0_i32_0 = arith.constant 0 : i32
    %c0_i32_1 = arith.constant 0 : i32
    return %c0_i32, %c0_i32_0 : i32, i32
  }
  func.func @transform_4(%arg0: i32) -> (i32, i32) {
    %c0_i32 = arith.constant 0 : i32
    %c0_i32_0 = arith.constant 0 : i32
    %c0_i32_1 = arith.constant 0 : i32
    return %c0_i32, %c0_i32_0 : i32, i32
  }
  func.func @transform_5(%arg0: i32) -> (i32, i32) {
    %c0_i32 = arith.constant 0 : i32
    %c0_i32_0 = arith.constant 0 : i32
    return %arg0, %c0_i32 : i32, i32
  }
  func.func @transform_6(%arg0: i32) -> (i32, i32) {
    %c0_i32 = arith.constant 0 : i32
    %c0_i32_0 = arith.constant 0 : i32
    return %arg0, %c0_i32 : i32, i32
  }
}

</mosaic_0001>

<llo_original>
// kernel: tpu_custom_call.1
$region0: #{tpu_custom_call.1}
  #allocation0 [shape = 'u32[]', space=smem, size = 0x4, offset = 0x4, fixed_abs, tag = 'smem constant byte address 0x4 - core index']
  #allocation1 [shape = 'u32[144,128]{1,0:T(1,128)}', space=vmem, size = 0x12000, scoped, tag = 'internal scratch']
  %s0 = inlined_call_operand.vmem [shape: s32[24,4], index: 0, kind: input, shape index: {}]
  %s1 = inlined_call_operand.vmem [shape: s32[24,4], index: 1, kind: input, shape index: {}]
  %s2 = inlined_call_operand.vmem [shape: s32[24,4], index: 2, kind: input, shape index: {}]
  %s3 = inlined_call_operand.vmem [shape: f32[32,128], index: 3, kind: input, shape index: {}]
  %s4 = inlined_call_operand.vmem [shape: f32[32,32], index: 4, kind: input, shape index: {}]
  %s5 = inlined_call_operand.hbm [shape: f32[24,128], index: 5, kind: output, shape index: {0}]
  %s6 = inlined_call_operand.hbm [shape: f32[24,128], index: 6, kind: output, shape index: {1}]
  %7 = xla_tuple %s5, %s6
  %s8 = sld [smem:[#allocation0]]
  $region61: #{tpu_custom_call.1} parent=0
    _
  %s10 = ssub.s32 1, %s8
  %s11 = scalar_select 0, %s10, %s8
  $region1: #{tpu_custom_call.1} parent=0
    #allocation2 [shape = 'u8[8192]{0}', space=vmem, size = 0x2000, scoped, tag = 'output window, operand 0']
    #allocation3 [shape = 's32[2]{0}', space=sflag, size = 0x8, scoped, tag = 'scoped memory for tpu_custom_call.1']
    #allocation4 [shape = 'u8[8192]{0}', space=vmem, size = 0x2000, scoped, tag = 'output window, operand 1']
    #allocation5 [shape = 's32[2]{0}', space=sflag, size = 0x8, scoped, tag = 'scoped memory for tpu_custom_call.1']
    %12 = vsyncpa [#allocation3], 0
    %s13 = scalar_lea.sflag [#allocation3], 1
    %14 = vsyncpa %s13, 0
    %15 = vsyncpa [#allocation5], 0
    %s16 = scalar_lea.sflag [#allocation5], 1
    %17 = vsyncpa %s16, 0
    loop: start=0, step=1, limit=5
    $region2: #{tpu_custom_call.1} parent=1 // loop_pre_header
      _
    $region3: #{tpu_custom_call.1} parent=1 // loop_header
      %s19 = sphi 0, %s23
      %p20 = scmp.ge.s32.totalorder %s19, 5
      %s29 = sphi 0, %s31
      %s32 = sphi 0, %s29
      %s33 = sphi 0, %s32
      %s49 = sphi 0, %s33
      %s55 = sphi 0, %s57
      %s58 = sphi 0, %s55
      %s59 = sphi 0, %s58
      %s75 = sphi 0, %s59
      %s81 = sphi 0, %s83
      %s84 = sphi 0, %s81
      %s85 = sphi 0, %s84
      %s101 = sphi 0, %s85
      %s105 = sphi 0, %s105
      %s107 = sphi 0, %s105
      %s108 = sphi 0, %s107
      %s122 = sphi 0, %s108
      %s126 = sphi 0, %s126
      %s128 = sphi 0, %s126
      %s129 = sphi 0, %s128
      %s143 = sphi 0, %s129
      %s149 = sphi 0, %s151
      %s152 = sphi 0, %s149
      %s153 = sphi 0, %s152
      %s169 = sphi 0, %s153
      %s175 = sphi 0, %s177
      %s178 = sphi 0, %s175
      %s179 = sphi 0, %s178
      %s195 = sphi 0, %s179
    $region4: #{tpu_custom_call.1} parent=1 // loop_header_branch
      %22 = sbr.rel (%p20) target = $region8
    $region5: #{tpu_custom_call.1} parent=1 // loop_body
      %s24 = ssub.s32 %s19, 1
      %s25 = ssub.s32 %s19, 2
      %s26 = sadd.s32 %s19, 1
      %s27 = ssub.s32 %s19, %s26
      %p28 = scmp.eq.s32.totalorder %s27, 0
      %s30 = sadd.s32 %s29, 1
      %s31 = scalar_select %p28, %s29, %s30
      %p34 = pneg %p28
      %p35 = scmp.eq.s32.totalorder %s19, 2
      %p36 = por %p34, %p35
      %p37 = scmp.ne.s32.totalorder %s29, %s32
      %p38 = scmp.eq.s32.totalorder %s19, 0
      %p39 = por %p37, %p38
      %p40 = scmp.ne.s32.totalorder %s29, %s32
      %p41 = scmp.eq.s32.totalorder %s24, 2
      %p42 = por %p40, %p41
      %p43 = scmp.ne.s32.totalorder %s32, %s33
      %p44 = scmp.eq.s32.totalorder %s24, 0
      %p45 = por %p43, %p44
      %p46 = scmp.ne.s32.totalorder %s32, %s33
      %p47 = scmp.eq.s32.totalorder %s25, 2
      %p48 = por %p46, %p47
      %p50 = scmp.ne.s32.totalorder %s33, %s49
      %p51 = scmp.eq.s32.totalorder %s25, 0
      %p52 = por %p50, %p51
      %s53 = ssub.s32 %s19, %s26
      %p54 = scmp.eq.s32.totalorder %s53, 0
      %s56 = sadd.s32 %s55, 1
      %s57 = scalar_select %p54, %s55, %s56
      %p60 = pneg %p54
      %p61 = scmp.eq.s32.totalorder %s19, 2
      %p62 = por %p60, %p61
      %p63 = scmp.ne.s32.totalorder %s55, %s58
      %p64 = scmp.eq.s32.totalorder %s19, 0
      %p65 = por %p63, %p64
      %p66 = scmp.ne.s32.totalorder %s55, %s58
      %p67 = scmp.eq.s32.totalorder %s24, 2
      %p68 = por %p66, %p67
      %p69 = scmp.ne.s32.totalorder %s58, %s59
      %p70 = scmp.eq.s32.totalorder %s24, 0
      %p71 = por %p69, %p70
      %p72 = scmp.ne.s32.totalorder %s58, %s59
      %p73 = scmp.eq.s32.totalorder %s25, 2
      %p74 = por %p72, %p73
      %p76 = scmp.ne.s32.totalorder %s59, %s75
      %p77 = scmp.eq.s32.totalorder %s25, 0
      %p78 = por %p76, %p77
      %s79 = ssub.s32 %s19, %s26
      %p80 = scmp.eq.s32.totalorder %s79, 0
      %s82 = sadd.s32 %s81, 1
      %s83 = scalar_select %p80, %s81, %s82
      %p86 = pneg %p80
      %p87 = scmp.eq.s32.totalorder %s19, 2
      %p88 = por %p86, %p87
      %p89 = scmp.ne.s32.totalorder %s81, %s84
      %p90 = scmp.eq.s32.totalorder %s19, 0
      %p91 = por %p89, %p90
      %p92 = scmp.ne.s32.totalorder %s81, %s84
      %p93 = scmp.eq.s32.totalorder %s24, 2
      %p94 = por %p92, %p93
      %p95 = scmp.ne.s32.totalorder %s84, %s85
      %p96 = scmp.eq.s32.totalorder %s24, 0
      %p97 = por %p95, %p96
      %p98 = scmp.ne.s32.totalorder %s84, %s85
      %p99 = scmp.eq.s32.totalorder %s25, 2
      %p100 = por %p98, %p99
      %p102 = scmp.ne.s32.totalorder %s85, %s101
      %p103 = scmp.eq.s32.totalorder %s25, 0
      %p104 = por %p102, %p103
      %s106 = sadd.s32 %s105, 1
      %p109 = scmp.eq.s32.totalorder %s19, 2
      %p110 = scmp.ne.s32.totalorder %s105, %s107
      %p111 = scmp.eq.s32.totalorder %s19, 0
      %p112 = por %p110, %p111
      %p113 = scmp.ne.s32.totalorder %s105, %s107
      %p114 = scmp.eq.s32.totalorder %s24, 2
      %p115 = por %p113, %p114
      %p116 = scmp.ne.s32.totalorder %s107, %s108
      %p117 = scmp.eq.s32.totalorder %s24, 0
      %p118 = por %p116, %p117
      %p119 = scmp.ne.s32.totalorder %s107, %s108
      %p120 = scmp.eq.s32.totalorder %s25, 2
      %p121 = por %p119, %p120
      %p123 = scmp.ne.s32.totalorder %s108, %s122
      %p124 = scmp.eq.s32.totalorder %s25, 0
      %p125 = por %p123, %p124
      %s127 = sadd.s32 %s126, 1
      %p130 = scmp.eq.s32.totalorder %s19, 2
      %p131 = scmp.ne.s32.totalorder %s126, %s128
      %p132 = scmp.eq.s32.totalorder %s19, 0
      %p133 = por %p131, %p132
      %p134 = scmp.ne.s32.totalorder %s126, %s128
      %p135 = scmp.eq.s32.totalorder %s24, 2
      %p136 = por %p134, %p135
      %p137 = scmp.ne.s32.totalorder %s128, %s129
      %p138 = scmp.eq.s32.totalorder %s24, 0
      %p139 = por %p137, %p138
      %p140 = scmp.ne.s32.totalorder %s128, %s129
      %p141 = scmp.eq.s32.totalorder %s25, 2
      %p142 = por %p140, %p141
      %p144 = scmp.ne.s32.totalorder %s129, %s143
      %p145 = scmp.eq.s32.totalorder %s25, 0
      %p146 = por %p144, %p145
      %s147 = ssub.s32 %s19, %s26
      %p148 = scmp.eq.s32.totalorder %s147, 0
      %s150 = sadd.s32 %s149, 1
      %s151 = scalar_select %p148, %s149, %s150
      %p154 = pneg %p148
      %p155 = scmp.eq.s32.totalorder %s19, 2
      %p156 = por %p154, %p155
      %p157 = scmp.ne.s32.totalorder %s149, %s152
      %p158 = scmp.eq.s32.totalorder %s19, 0
      %p159 = por %p157, %p158
      %p160 = scmp.ne.s32.totalorder %s149, %s152
      %p161 = scmp.eq.s32.totalorder %s24, 2
      %p162 = por %p160, %p161
      %p163 = scmp.ne.s32.totalorder %s152, %s153
      %p164 = scmp.eq.s32.totalorder %s24, 0
      %p165 = por %p163, %p164
      %p166 = scmp.ne.s32.totalorder %s152, %s153
      %p167 = scmp.eq.s32.totalorder %s25, 2
      %p168 = por %p166, %p167
      %p170 = scmp.ne.s32.totalorder %s153, %s169
      %p171 = scmp.eq.s32.totalorder %s25, 0
      %p172 = por %p170, %p171
      %s173 = ssub.s32 %s19, %s26
      %p174 = scmp.eq.s32.totalorder %s173, 0
      %s176 = sadd.s32 %s175, 1
      %s177 = scalar_select %p174, %s175, %s176
      %p180 = pneg %p174
      %p181 = scmp.eq.s32.totalorder %s19, 2
      %p182 = por %p180, %p181
      %p183 = scmp.ne.s32.totalorder %s175, %s178
      %p184 = scmp.eq.s32.totalorder %s19, 0
      %p185 = por %p183, %p184
      %p186 = scmp.ne.s32.totalorder %s175, %s178
      %p187 = scmp.eq.s32.totalorder %s24, 2
      %p188 = por %p186, %p187
      %p189 = scmp.ne.s32.totalorder %s178, %s179
      %p190 = scmp.eq.s32.totalorder %s24, 0
      %p191 = por %p189, %p190
      %p192 = scmp.ne.s32.totalorder %s178, %s179
      %p193 = scmp.eq.s32.totalorder %s25, 2
      %p194 = por %p192, %p193
      %p196 = scmp.ne.s32.totalorder %s179, %s195
      %p197 = scmp.eq.s32.totalorder %s25, 0
      %p198 = por %p196, %p197
      %p199 = scmp.le.s32.totalorder 1, %s19
      %p200 = scmp.lt.s32.totalorder %s19, 4
      %p201 = pnand %p199, %p200
      %p202 = pneg %p201
      // Predicated region
      $region9: #{tpu_custom_call.1} parent=5 // pred_check
        _
      $region10: #{tpu_custom_call.1} parent=5 // pred_check_branch
        %204 = sbr.rel (%p201) target = $region12
      $region11: #{tpu_custom_call.1} parent=5 // pred_region
        %s205 = ssub.s32 %s19, 1
        // Predicated region
        $region13: #{tpu_custom_call.1} parent=11 // pred_check
          %p206 = pneg %p118
        $region14: #{tpu_custom_call.1} parent=11 // pred_check_branch
          %208 = sbr.rel (%p206) target = $region16
        $region15: #{tpu_custom_call.1} parent=11 // pred_region
          _
        $region16: #{tpu_custom_call.1} parent=11 // pred_fallthru
          _
        // Predicated region
        $region17: #{tpu_custom_call.1} parent=11 // pred_check
          %p209 = pneg %p139
        $region18: #{tpu_custom_call.1} parent=11 // pred_check_branch
          %211 = sbr.rel (%p209) target = $region20
        $region19: #{tpu_custom_call.1} parent=11 // pred_region
          _
        $region20: #{tpu_custom_call.1} parent=11 // pred_fallthru
          _
      $region12: #{tpu_custom_call.1} parent=5 // pred_fallthru
        _
      %p212 = scmp.lt.s32.totalorder %s19, 3
      // Predicated region
      $region21: #{tpu_custom_call.1} parent=5 // pred_check
        %p213 = pneg %p212
      $region22: #{tpu_custom_call.1} parent=5 // pred_check_branch
        %215 = sbr.rel (%p213) target = $region24
      $region23: #{tpu_custom_call.1} parent=5 // pred_region
        // Predicated region
        $region25: #{tpu_custom_call.1} parent=23 // pred_check
          %p216 = pneg %p39
        $region26: #{tpu_custom_call.1} parent=23 // pred_check_branch
          %218 = sbr.rel (%p216) target = $region28
        $region27: #{tpu_custom_call.1} parent=23 // pred_region
          %p219 = scmp.lt.s32.totalorder %s19, 2
          %s220 = scalar_select %p219, %s19, 2
          %s221 = smul.addr %s220, 8
          %s222 = scalar_lea.vmem %s0, %s221
        $region28: #{tpu_custom_call.1} parent=23 // pred_fallthru
          _
        // Predicated region
        $region29: #{tpu_custom_call.1} parent=23 // pred_check
          %p223 = pneg %p65
        $region30: #{tpu_custom_call.1} parent=23 // pred_check_branch
          %225 = sbr.rel (%p223) target = $region32
        $region31: #{tpu_custom_call.1} parent=23 // pred_region
          %p226 = scmp.lt.s32.totalorder %s19, 2
          %s227 = scalar_select %p226, %s19, 2
          %s228 = smul.addr %s227, 8
          %s229 = scalar_lea.vmem %s1, %s228
        $region32: #{tpu_custom_call.1} parent=23 // pred_fallthru
          _
        // Predicated region
        $region33: #{tpu_custom_call.1} parent=23 // pred_check
          %p230 = pneg %p91
        $region34: #{tpu_custom_call.1} parent=23 // pred_check_branch
          %232 = sbr.rel (%p230) target = $region36
        $region35: #{tpu_custom_call.1} parent=23 // pred_region
          %p233 = scmp.lt.s32.totalorder %s19, 2
          %s234 = scalar_select %p233, %s19, 2
          %s235 = smul.addr %s234, 8
          %s236 = scalar_lea.vmem %s2, %s235
        $region36: #{tpu_custom_call.1} parent=23 // pred_fallthru
          _
      $region24: #{tpu_custom_call.1} parent=5 // pred_fallthru
        _
      %p237 = scmp.le.s32.totalorder 1, %s19
      %p238 = scmp.lt.s32.totalorder %s19, 4
      %p239 = pnand %p237, %p238
      %p240 = pneg %p239
      // Predicated region
      $region37: #{tpu_custom_call.1} parent=5 // pred_check
        _
      $region38: #{tpu_custom_call.1} parent=5 // pred_check_branch
        %242 = sbr.rel (%p239) target = $region40
      $region39: #{tpu_custom_call.1} parent=5 // pred_region
        %s243 = ssub.s32 %s19, 1
        %p244 = scmp.lt.s32.totalorder %s24, 2
        %s245 = scalar_select %p244, %s24, 2
        %s246 = smul.addr %s245, 8
        %s247 = scalar_lea.vmem %s0, %s246
        %p248 = pneg %p45
        %p249 = pneg %p42
        %p250 = scmp.lt.s32.totalorder %s24, 2
        %s251 = scalar_select %p250, %s24, 2
        %s252 = smul.addr %s251, 8
        %s253 = scalar_lea.vmem %s1, %s252
        %p254 = pneg %p71
        %p255 = pneg %p68
        %p256 = scmp.lt.s32.totalorder %s24, 2
        %s257 = scalar_select %p256, %s24, 2
        %s258 = smul.addr %s257, 8
        %s259 = scalar_lea.vmem %s2, %s258
        %p260 = pneg %p97
        %p261 = pneg %p94
        %p262 = pneg %p118
        %p263 = pneg %p115
        %p264 = pneg %p139
        %p265 = pneg %p136
        %p266 = pneg %p165
        %p267 = pneg %p162
        %s268 = sand.u32 %s152, 1
        %s269 = scalar_lea.sflag [#allocation3], %s268
        %s270 = sand.u32 %s152, 1
        %s271 = smul.addr %s270, 8
        %s272 = scalar_lea.vmem [#allocation2], %s271
        %p273 = pneg %p191
        %p274 = pneg %p188
        %s275 = sand.u32 %s178, 1
        %s276 = scalar_lea.sflag [#allocation5], %s275
        %s277 = sand.u32 %s178, 1
        %s278 = smul.addr %s277, 8
        %s279 = scalar_lea.vmem [#allocation4], %s278
        %p280 = scmp.lt.s32.totalorder %s24, 2
        %s281 = scalar_select %p280, %s24, 2
        %s282 = smul.addr %s281, 8
        %s283 = scalar_lea.vmem %s0, %s282
        %p284 = scmp.lt.s32.totalorder %s24, 2
        %s285 = scalar_select %p284, %s24, 2
        %s286 = smul.addr %s285, 8
        %s287 = scalar_lea.vmem %s1, %s286
        %p288 = scmp.lt.s32.totalorder %s24, 2
        %s289 = scalar_select %p288, %s24, 2
        %s290 = smul.addr %s289, 8
        %s291 = scalar_lea.vmem %s2, %s290
        %v292 = vlaneseq
        %v293 = vand.u32 %v292, 127
        %v294 = vld [vmem:[%s283] sm:$0xff]
        %vm295 = vcmp.ge.s32.totalorder %v293, 0
        %vm296 = vcmp.lt.s32.totalorder %v293, 32
        %vm297 = vmand %vm295, %vm296
        %298 = vset.pattern.permute.xlu0 0
        %299 = vperm.xlu0 %298, %v294
        %v300 = vpop.permute.xlu0 %299
        %v301 = vsel %vm297, %v300, 0
        %vm302 = vcmp.ge.s32.totalorder %v293, 32
        %vm303 = vcmp.lt.s32.totalorder %v293, 64
        %vm304 = vmand %vm302, %vm303
        %305 = vset.pattern.permute.xlu0 1
        %306 = vperm.xlu0 %305, %v294
        %v307 = vpop.permute.xlu0 %306
        %v308 = vsel %vm304, %v307, %v301
        %vm309 = vcmp.ge.s32.totalorder %v293, 64
        %vm310 = vcmp.lt.s32.totalorder %v293, 96
        %vm311 = vmand %vm309, %vm310
        %312 = vset.pattern.permute.xlu0 2
        %313 = vperm.xlu0 %312, %v294
        %v314 = vpop.permute.xlu0 %313
        %v315 = vsel %vm311, %v314, %v308
        %vm316 = vcmp.ge.s32.totalorder %v293, 96
        %vm317 = vcmp.lt.s32.totalorder %v293, 128
        %vm318 = vmand %vm316, %vm317
        %319 = vset.pattern.permute.xlu0 3
        %320 = vperm.xlu0 %319, %v294
        %v321 = vpop.permute.xlu0 %320
        %v322 = vsel %vm318, %v321, %v315
        %vm323 = vcmp.eq.s32.totalorder %v322, 0
        %v324 = vld [vmem:[%s3] sm:$0x1]
        %v325 = vlaneseq
        %v326 = vshrl.u32 %v325, 7
        %v327 = vsub.s32 0, %v326
        %v328 = vrot.slane %v324, %v327
        %v329 = vsel %vm323, %v328, 0.0
        %v330 = vadd.f32 %v329, 0.0
        %vm331 = vcmp.eq.s32.totalorder %v322, 1
        %v332 = vld [vmem:[%s3 + $0x1] sm:$0x1]
        %v333 = vlaneseq
        %v334 = vshrl.u32 %v333, 7
        %v335 = vsub.s32 0, %v334
        %v336 = vrot.slane %v332, %v335
        %v337 = vsel %vm331, %v336, 0.0
        %v338 = vadd.f32 %v330, %v337
        %vm339 = vcmp.eq.s32.totalorder %v322, 2
        %v340 = vld [vmem:[%s3 + $0x2] sm:$0x1]
        %v341 = vlaneseq
        %v342 = vshrl.u32 %v341, 7
        %v343 = vsub.s32 0, %v342
        %v344 = vrot.slane %v340, %v343
        %v345 = vsel %vm339, %v344, 0.0
        %v346 = vadd.f32 %v338, %v345
        %vm347 = vcmp.eq.s32.totalorder %v322, 3
        %v348 = vld [vmem:[%s3 + $0x3] sm:$0x1]
        %v349 = vlaneseq
        %v350 = vshrl.u32 %v349, 7
        %v351 = vsub.s32 0, %v350
        %v352 = vrot.slane %v348, %v351
        %v353 = vsel %vm347, %v352, 0.0
        %v354 = vadd.f32 %v346, %v353
        %vm355 = vcmp.eq.s32.totalorder %v322, 4
        %v356 = vld [vmem:[%s3 + $0x4] sm:$0x1]
        %v357 = vlaneseq
        %v358 = vshrl.u32 %v357, 7
        %v359 = vsub.s32 0, %v358
        %v360 = vrot.slane %v356, %v359
        %v361 = vsel %vm355, %v360, 0.0
        %v362 = vadd.f32 %v354, %v361
        %vm363 = vcmp.eq.s32.totalorder %v322, 5
        %v364 = vld [vmem:[%s3 + $0x5] sm:$0x1]
        %v365 = vlaneseq
        %v366 = vshrl.u32 %v365, 7
        %v367 = vsub.s32 0, %v366
        %v368 = vrot.slane %v364, %v367
        %v369 = vsel %vm363, %v368, 0.0
        %v370 = vadd.f32 %v362, %v369
        %vm371 = vcmp.eq.s32.totalorder %v322, 6
        %v372 = vld [vmem:[%s3 + $0x6] sm:$0x1]
        %v373 = vlaneseq
        %v374 = vshrl.u32 %v373, 7
        %v375 = vsub.s32 0, %v374
        %v376 = vrot.slane %v372, %v375
        %v377 = vsel %vm371, %v376, 0.0
        %v378 = vadd.f32 %v370, %v377
        %vm379 = vcmp.eq.s32.totalorder %v322, 7
        %v380 = vld [vmem:[%s3 + $0x7] sm:$0x1]
        %v381 = vlaneseq
        %v382 = vshrl.u32 %v381, 7
        %v383 = vsub.s32 0, %v382
        %v384 = vrot.slane %v380, %v383
        %v385 = vsel %vm379, %v384, 0.0
        %v386 = vadd.f32 %v378, %v385
        %vm387 = vcmp.eq.s32.totalorder %v322, 8
        %v388 = vld [vmem:[%s3 + $0x8] sm:$0x1]
        %v389 = vlaneseq
        %v390 = vshrl.u32 %v389, 7
        %v391 = vsub.s32 0, %v390
        %v392 = vrot.slane %v388, %v391
        %v393 = vsel %vm387, %v392, 0.0
        %v394 = vadd.f32 %v386, %v393
        %vm395 = vcmp.eq.s32.totalorder %v322, 9
        %v396 = vld [vmem:[%s3 + $0x9] sm:$0x1]
        %v397 = vlaneseq
        %v398 = vshrl.u32 %v397, 7
        %v399 = vsub.s32 0, %v398
        %v400 = vrot.slane %v396, %v399
        %v401 = vsel %vm395, %v400, 0.0
        %v402 = vadd.f32 %v394, %v401
        %vm403 = vcmp.eq.s32.totalorder %v322, 10
        %v404 = vld [vmem:[%s3 + $0xa] sm:$0x1]
        %v405 = vlaneseq
        %v406 = vshrl.u32 %v405, 7
        %v407 = vsub.s32 0, %v406
        %v408 = vrot.slane %v404, %v407
        %v409 = vsel %vm403, %v408, 0.0
        %v410 = vadd.f32 %v402, %v409
        %vm411 = vcmp.eq.s32.totalorder %v322, 11
        %v412 = vld [vmem:[%s3 + $0xb] sm:$0x1]
        %v413 = vlaneseq
        %v414 = vshrl.u32 %v413, 7
        %v415 = vsub.s32 0, %v414
        %v416 = vrot.slane %v412, %v415
        %v417 = vsel %vm411, %v416, 0.0
        %v418 = vadd.f32 %v410, %v417
        %vm419 = vcmp.eq.s32.totalorder %v322, 12
        %v420 = vld [vmem:[%s3 + $0xc] sm:$0x1]
        %v421 = vlaneseq
        %v422 = vshrl.u32 %v421, 7
        %v423 = vsub.s32 0, %v422
        %v424 = vrot.slane %v420, %v423
        %v425 = vsel %vm419, %v424, 0.0
        %v426 = vadd.f32 %v418, %v425
        %vm427 = vcmp.eq.s32.totalorder %v322, 13
        %v428 = vld [vmem:[%s3 + $0xd] sm:$0x1]
        %v429 = vlaneseq
        %v430 = vshrl.u32 %v429, 7
        %v431 = vsub.s32 0, %v430
        %v432 = vrot.slane %v428, %v431
        %v433 = vsel %vm427, %v432, 0.0
        %v434 = vadd.f32 %v426, %v433
        %vm435 = vcmp.eq.s32.totalorder %v322, 14
        %v436 = vld [vmem:[%s3 + $0xe] sm:$0x1]
        %v437 = vlaneseq
        %v438 = vshrl.u32 %v437, 7
        %v439 = vsub.s32 0, %v438
        %v440 = vrot.slane %v436, %v439
        %v441 = vsel %vm435, %v440, 0.0
        %v442 = vadd.f32 %v434, %v441
        %vm443 = vcmp.eq.s32.totalorder %v322, 15
        %v444 = vld [vmem:[%s3 + $0xf] sm:$0x1]
        %v445 = vlaneseq
        %v446 = vshrl.u32 %v445, 7
        %v447 = vsub.s32 0, %v446
        %v448 = vrot.slane %v444, %v447
        %v449 = vsel %vm443, %v448, 0.0
        %v450 = vadd.f32 %v442, %v449
        %vm451 = vcmp.eq.s32.totalorder %v322, 16
        %v452 = vld [vmem:[%s3 + $0x10] sm:$0x1]
        %v453 = vlaneseq
        %v454 = vshrl.u32 %v453, 7
        %v455 = vsub.s32 0, %v454
        %v456 = vrot.slane %v452, %v455
        %v457 = vsel %vm451, %v456, 0.0
        %v458 = vadd.f32 %v450, %v457
        %vm459 = vcmp.eq.s32.totalorder %v322, 17
        %v460 = vld [vmem:[%s3 + $0x11] sm:$0x1]
        %v461 = vlaneseq
        %v462 = vshrl.u32 %v461, 7
        %v463 = vsub.s32 0, %v462
        %v464 = vrot.slane %v460, %v463
        %v465 = vsel %vm459, %v464, 0.0
        %v466 = vadd.f32 %v458, %v465
        %vm467 = vcmp.eq.s32.totalorder %v322, 18
        %v468 = vld [vmem:[%s3 + $0x12] sm:$0x1]
        %v469 = vlaneseq
        %v470 = vshrl.u32 %v469, 7
        %v471 = vsub.s32 0, %v470
        %v472 = vrot.slane %v468, %v471
        %v473 = vsel %vm467, %v472, 0.0
        %v474 = vadd.f32 %v466, %v473
        %vm475 = vcmp.eq.s32.totalorder %v322, 19
        %v476 = vld [vmem:[%s3 + $0x13] sm:$0x1]
        %v477 = vlaneseq
        %v478 = vshrl.u32 %v477, 7
        %v479 = vsub.s32 0, %v478
        %v480 = vrot.slane %v476, %v479
        %v481 = vsel %vm475, %v480, 0.0
        %v482 = vadd.f32 %v474, %v481
        %vm483 = vcmp.eq.s32.totalorder %v322, 20
        %v484 = vld [vmem:[%s3 + $0x14] sm:$0x1]
        %v485 = vlaneseq
        %v486 = vshrl.u32 %v485, 7
        %v487 = vsub.s32 0, %v486
        %v488 = vrot.slane %v484, %v487
        %v489 = vsel %vm483, %v488, 0.0
        %v490 = vadd.f32 %v482, %v489
        %vm491 = vcmp.eq.s32.totalorder %v322, 21
        %v492 = vld [vmem:[%s3 + $0x15] sm:$0x1]
        %v493 = vlaneseq
        %v494 = vshrl.u32 %v493, 7
        %v495 = vsub.s32 0, %v494
        %v496 = vrot.slane %v492, %v495
        %v497 = vsel %vm491, %v496, 0.0
        %v498 = vadd.f32 %v490, %v497
        %vm499 = vcmp.eq.s32.totalorder %v322, 22
        %v500 = vld [vmem:[%s3 + $0x16] sm:$0x1]
        %v501 = vlaneseq
        %v502 = vshrl.u32 %v501, 7
        %v503 = vsub.s32 0, %v502
        %v504 = vrot.slane %v500, %v503
        %v505 = vsel %vm499, %v504, 0.0
        %v506 = vadd.f32 %v498, %v505
        %vm507 = vcmp.eq.s32.totalorder %v322, 23
        %v508 = vld [vmem:[%s3 + $0x17] sm:$0x1]
        %v509 = vlaneseq
        %v510 = vshrl.u32 %v509, 7
        %v511 = vsub.s32 0, %v510
        %v512 = vrot.slane %v508, %v511
        %v513 = vsel %vm507, %v512, 0.0
        %v514 = vadd.f32 %v506, %v513
        %vm515 = vcmp.eq.s32.totalorder %v322, 24
        %v516 = vld [vmem:[%s3 + $0x18] sm:$0x1]
        %v517 = vlaneseq
        %v518 = vshrl.u32 %v517, 7
        %v519 = vsub.s32 0, %v518
        %v520 = vrot.slane %v516, %v519
        %v521 = vsel %vm515, %v520, 0.0
        %v522 = vadd.f32 %v514, %v521
        %vm523 = vcmp.eq.s32.totalorder %v322, 25
        %v524 = vld [vmem:[%s3 + $0x19] sm:$0x1]
        %v525 = vlaneseq
        %v526 = vshrl.u32 %v525, 7
        %v527 = vsub.s32 0, %v526
        %v528 = vrot.slane %v524, %v527
        %v529 = vsel %vm523, %v528, 0.0
        %v530 = vadd.f32 %v522, %v529
        %vm531 = vcmp.eq.s32.totalorder %v322, 26
        %v532 = vld [vmem:[%s3 + $0x1a] sm:$0x1]
        %v533 = vlaneseq
        %v534 = vshrl.u32 %v533, 7
        %v535 = vsub.s32 0, %v534
        %v536 = vrot.slane %v532, %v535
        %v537 = vsel %vm531, %v536, 0.0
        %v538 = vadd.f32 %v530, %v537
        %vm539 = vcmp.eq.s32.totalorder %v322, 27
        %v540 = vld [vmem:[%s3 + $0x1b] sm:$0x1]
        %v541 = vlaneseq
        %v542 = vshrl.u32 %v541, 7
        %v543 = vsub.s32 0, %v542
        %v544 = vrot.slane %v540, %v543
        %v545 = vsel %vm539, %v544, 0.0
        %v546 = vadd.f32 %v538, %v545
        %vm547 = vcmp.eq.s32.totalorder %v322, 28
        %v548 = vld [vmem:[%s3 + $0x1c] sm:$0x1]
        %v549 = vlaneseq
        %v550 = vshrl.u32 %v549, 7
        %v551 = vsub.s32 0, %v550
        %v552 = vrot.slane %v548, %v551
        %v553 = vsel %vm547, %v552, 0.0
        %v554 = vadd.f32 %v546, %v553
        %vm555 = vcmp.eq.s32.totalorder %v322, 29
        %v556 = vld [vmem:[%s3 + $0x1d] sm:$0x1]
        %v557 = vlaneseq
        %v558 = vshrl.u32 %v557, 7
        %v559 = vsub.s32 0, %v558
        %v560 = vrot.slane %v556, %v559
        %v561 = vsel %vm555, %v560, 0.0
        %v562 = vadd.f32 %v554, %v561
        %vm563 = vcmp.eq.s32.totalorder %v322, 30
        %v564 = vld [vmem:[%s3 + $0x1e] sm:$0x1]
        %v565 = vlaneseq
        %v566 = vshrl.u32 %v565, 7
        %v567 = vsub.s32 0, %v566
        %v568 = vrot.slane %v564, %v567
        %v569 = vsel %vm563, %v568, 0.0
        %v570 = vadd.f32 %v562, %v569
        %vm571 = vcmp.eq.s32.totalorder %v322, 31
        %v572 = vld [vmem:[%s3 + $0x1f] sm:$0x1]
        %v573 = vlaneseq
        %v574 = vshrl.u32 %v573, 7
        %v575 = vsub.s32 0, %v574
        %v576 = vrot.slane %v572, %v575
        %v577 = vsel %vm571, %v576, 0.0
        %v578 = vadd.f32 %v570, %v577
        %579 = vst [vmem:[%s272] sm:$0xff] %v578
        %v580 = vld [vmem:[%s287] sm:$0xff]
        %581 = vset.pattern.permute.xlu0 0
        %582 = vperm.xlu0 %581, %v580
        %v583 = vpop.permute.xlu0 %582
        %vm584 = vcmp.eq.s32.totalorder %v293, %v583
        %v585 = vsel %vm584, 1, 0
        %v586 = vcvt.s32.f32 %v585
        %v587 = vadd.f32 %v586, 0.0
        %588 = vset.pattern.permute.xlu0 1
        %589 = vperm.xlu0 %588, %v580
        %v590 = vpop.permute.xlu0 %589
        %vm591 = vcmp.eq.s32.totalorder %v293, %v590
        %v592 = vsel %vm591, 1, 0
        %v593 = vcvt.s32.f32 %v592
        %v594 = vadd.f32 %v587, %v593
        %595 = vset.pattern.permute.xlu0 2
        %596 = vperm.xlu0 %595, %v580
        %v597 = vpop.permute.xlu0 %596
        %vm598 = vcmp.eq.s32.totalorder %v293, %v597
        %v599 = vsel %vm598, 1, 0
        %v600 = vcvt.s32.f32 %v599
        %v601 = vadd.f32 %v594, %v600
        %602 = vset.pattern.permute.xlu0 3
        %603 = vperm.xlu0 %602, %v580
        %v604 = vpop.permute.xlu0 %603
        %vm605 = vcmp.eq.s32.totalorder %v293, %v604
        %v606 = vsel %vm605, 1, 0
        %v607 = vcvt.s32.f32 %v606
        %v608 = vadd.f32 %v601, %v607
        %v609 = vld [vmem:[%s291] sm:$0xff]
        %610 = vset.pattern.permute.xlu0 0
        %611 = vperm.xlu0 %610, %v609
        %v612 = vpop.permute.xlu0 %611
        %vm613 = vcmp.eq.s32.totalorder %v293, %v612
        %v614 = vsel %vm613, 1, 0
        %v615 = vcvt.s32.f32 %v614
        %v616 = vadd.f32 %v615, 0.0
        %617 = vset.pattern.permute.xlu0 1
        %618 = vperm.xlu0 %617, %v609
        %v619 = vpop.permute.xlu0 %618
        %vm620 = vcmp.eq.s32.totalorder %v293, %v619
        %v621 = vsel %vm620, 1, 0
        %v622 = vcvt.s32.f32 %v621
        %v623 = vadd.f32 %v616, %v622
        %624 = vset.pattern.permute.xlu0 2
        %625 = vperm.xlu0 %624, %v609
        %v626 = vpop.permute.xlu0 %625
        %vm627 = vcmp.eq.s32.totalorder %v293, %v626
        %v628 = vsel %vm627, 1, 0
        %v629 = vcvt.s32.f32 %v628
        %v630 = vadd.f32 %v623, %v629
        %631 = vset.pattern.permute.xlu0 3
        %632 = vperm.xlu0 %631, %v609
        %v633 = vpop.permute.xlu0 %632
        %vm634 = vcmp.eq.s32.totalorder %v293, %v633
        %v635 = vsel %vm634, 1, 0
        %v636 = vcvt.s32.f32 %v635
        %v637 = vadd.f32 %v630, %v636
        %v638 = vld [vmem:[%s4] sm:$0xff]
        %v639 = vld [vmem:[%s4 + $0x8] sm:$0xff]
        %v640 = vld [vmem:[%s4 + $0x10] sm:$0xff]
        %v641 = vld [vmem:[%s4 + $0x18] sm:$0xff]
        %vm642 = vcmask 261120
        %v643 = vsel %vm642, %v638, -inf
        %v644 = vsel %vm642, %v639, -inf
        %v645 = vsel %vm642, %v640, -inf
        %v646 = vsel %vm642, %v641, -inf
        %v647 = vmax.f32 %v643, %v644
        %v648 = vmax.f32 %v645, %v646
        %v649 = vmax.f32 %v647, %v648
        %v650 = vrot.slane %v649, 4
        %v651 = vmax.f32 %v649, %v650
        %v652 = vrot.slane %v651, 2
        %v653 = vmax.f32 %v651, %v652
        %v654 = vrot.slane %v653, 1
        %v655 = vmax.f32 %v653, %v654
        %v656 = vsub.f32 %v638, %v655
        %v657 = vsub.f32 %v639, %v655
        %v658 = vsub.f32 %v640, %v655
        %v659 = vsub.f32 %v641, %v655
        %v660 = vmul.f32 %v656, 1.442695
        %v661 = vpow.pop %v660
        %v662 = vmul.f32 %v657, 1.442695
        %v663 = vpow.pop %v662
        %v664 = vmul.f32 %v658, 1.442695
        %v665 = vpow.pop %v664
        %v666 = vmul.f32 %v659, 1.442695
        %v667 = vpow.pop %v666
        %v668 = vsel %vm642, %v661, 0.0
        %v669 = vsel %vm642, %v663, 0.0
        %v670 = vadd.f32 %v668, %v669
        %v671 = vsel %vm642, %v665, 0.0
        %v672 = vadd.f32 %v670, %v671
        %v673 = vsel %vm642, %v667, 0.0
        %v674 = vadd.f32 %v672, %v673
        %v675 = vrot.slane %v674, 4
        %v676 = vadd.f32 %v674, %v675
        %v677 = vrot.slane %v676, 2
        %v678 = vadd.f32 %v676, %v677
        %v679 = vrot.slane %v678, 1
        %v680 = vadd.f32 %v678, %v679
        %v681 = vlog2.pop %v680
        %v682 = vmul.f32 %v681, 0.6931472
        %v683 = vadd.f32 %v655, %v682
        %v684 = vmul.f32 %v637, %v683
        %v685 = vsel %vm642, %v684, 0.0
        %686 = vadd.xlane.f32.xlu0 %v685
        %v687 = vpop.xlane.xlu0 %686
        %v688 = vrot.slane %v687, 4
        %v689 = vadd.f32 %v687, %v688
        %v690 = vrot.slane %v689, 2
        %v691 = vadd.f32 %v689, %v690
        %v692 = vrot.slane %v691, 1
        %v693 = vadd.f32 %v691, %v692
        %s694 = vtos %v693
        %v695 = vmul.f32 %v608, %v578
        %696 = vadd.xlane.f32.xlu0 %v695
        %v697 = vpop.xlane.xlu0 %696
        %v698 = vrot.slane %v697, 4
        %v699 = vadd.f32 %v697, %v698
        %v700 = vrot.slane %v699, 2
        %v701 = vadd.f32 %v699, %v700
        %v702 = vrot.slane %v701, 1
        %v703 = vadd.f32 %v701, %v702
        %s704 = vtos %v703
        %s705 = ssub.f32 %s694, %s704
        %v706 = vstv %s705
        %v707 = vadd.f32 %v706, 0.0
        %708 = vst [vmem:[%s279] sm:$0xff] %v707
        %s709 = sand.u32 %s152, 1
        %s710 = scalar_lea.sflag [#allocation3], %s709
        %s711 = sand.u32 %s152, 1
        %s712 = smul.addr %s711, 8
        %s713 = scalar_lea.vmem [#allocation2], %s712
        %s714 = sand.u32 %s178, 1
        %s715 = scalar_lea.sflag [#allocation5], %s714
        %s716 = sand.u32 %s178, 1
        %s717 = smul.addr %s716, 8
        %s718 = scalar_lea.vmem [#allocation4], %s717
        // Predicated region
        $region41: #{tpu_custom_call.1} parent=39 // pred_check
          %p719 = pneg %p162
        $region42: #{tpu_custom_call.1} parent=39 // pred_check_branch
          %721 = sbr.rel (%p719) target = $region44
        $region43: #{tpu_custom_call.1} parent=39 // pred_region
          %s723 = ssub.s32 128, 128
          %724 = vsyncadd %s710, %s723
          %s725 = smul.addr %s24, 128
          %s726 = scalar_lea.hbm %s5, %s725
          %s728 = sshll.u32 %s713, 4
          %s729 = int_to_ptr.vmem [resolvable:$true] %s728
          %731 = dma.vmem_to_hbm [thread:$0]  %s729, 128, %s726, %s710
        $region44: #{tpu_custom_call.1} parent=39 // pred_fallthru
          _
        // Predicated region
        $region45: #{tpu_custom_call.1} parent=39 // pred_check
          %p732 = pneg %p188
        $region46: #{tpu_custom_call.1} parent=39 // pred_check_branch
          %734 = sbr.rel (%p732) target = $region48
        $region47: #{tpu_custom_call.1} parent=39 // pred_region
          %s736 = ssub.s32 128, 128
          %737 = vsyncadd %s715, %s736
          %s738 = smul.addr %s24, 128
          %s739 = scalar_lea.hbm %s6, %s738
          %s741 = sshll.u32 %s718, 4
          %s742 = int_to_ptr.vmem [resolvable:$true] %s741
          %744 = dma.vmem_to_hbm [thread:$0]  %s742, 128, %s739, %s715
        $region48: #{tpu_custom_call.1} parent=39 // pred_fallthru
          _
      $region40: #{tpu_custom_call.1} parent=5 // pred_fallthru
        _
      %p745 = scmp.le.s32.totalorder 2, %s19
      // Predicated region
      $region49: #{tpu_custom_call.1} parent=5 // pred_check
        %p746 = pneg %p745
      $region50: #{tpu_custom_call.1} parent=5 // pred_check_branch
        %748 = sbr.rel (%p746) target = $region52
      $region51: #{tpu_custom_call.1} parent=5 // pred_region
        %s749 = ssub.s32 %s19, 2
        // Predicated region
        $region53: #{tpu_custom_call.1} parent=51 // pred_check
          %p750 = pneg %p168
        $region54: #{tpu_custom_call.1} parent=51 // pred_check_branch
          %752 = sbr.rel (%p750) target = $region56
        $region55: #{tpu_custom_call.1} parent=51 // pred_region
          %s753 = sand.u32 %s153, 1
          %s754 = scalar_lea.sflag [#allocation3], %s753
          %s755 = sand.u32 %s153, 1
          %s756 = smul.addr %s755, 8
          %s757 = scalar_lea.vmem [#allocation2], %s756
          %758 = dma.done %s754, 128
        $region56: #{tpu_custom_call.1} parent=51 // pred_fallthru
          _
        // Predicated region
        $region57: #{tpu_custom_call.1} parent=51 // pred_check
          %p759 = pneg %p194
        $region58: #{tpu_custom_call.1} parent=51 // pred_check_branch
          %761 = sbr.rel (%p759) target = $region60
        $region59: #{tpu_custom_call.1} parent=51 // pred_region
          %s762 = sand.u32 %s179, 1
          %s763 = scalar_lea.sflag [#allocation5], %s762
          %s764 = sand.u32 %s179, 1
          %s765 = smul.addr %s764, 8
          %s766 = scalar_lea.vmem [#allocation4], %s765
          %767 = dma.done %s763, 128
        $region60: #{tpu_custom_call.1} parent=51 // pred_fallthru
          _
      $region52: #{tpu_custom_call.1} parent=5 // pred_fallthru
        _
    $region6: #{tpu_custom_call.1} parent=1 // loop_footer
      %s23 = sadd.s32 1, %s19
    $region7: #{tpu_custom_call.1} parent=1 // loop_footer_branch
      %18 = sbr.rel target = $region3
    $region8: #{tpu_custom_call.1} parent=1 // loop_exit
      _
    %768 = vsyncpa [#allocation3], 1
    %s769 = scalar_lea.sflag [#allocation3], 1
    %770 = vsyncpa %s769, 1
    %771 = vsyncpa [#allocation5], 1
    %s772 = scalar_lea.sflag [#allocation5], 1
    %773 = vsyncpa %s772, 1

</llo_original>
